<compile_context>
chip_gen: v7x
topology: tpu7x:2x2x1
jax: 0.10.0
libtpu: 0.0.40
codegen_flags: <defaults>
</compile_context>

<pallas_src>
import functools

import jax
import jax.numpy as jnp
import numpy as np
from jax.experimental import pallas as pl
from jax.experimental.pallas import tpu as pltpu


def _agcrn_cell_kernel(xs_ref, s_ref, e_ref, wg_ref, wu_ref, bg_ref, bu_ref,
                       h_ref, *, dim_in, hidden, cheb_k, embed_dim):
    # xs_ref block: (Cin, N)  rows = [x channels ; state channels], lanes = nodes
    xs = xs_ref[...]                          # (Cin, N) f32
    st = xs[dim_in:, :]                       # (H, N)   f32
    s_t = s_ref[...]                          # (N, N)   f32   (= S^T)
    e_t = e_ref[...]                          # (D, N)   f32   (= E^T)

    def diffuse(f0):
        # Chebyshev recurrence applied to features (transposed):
        #   (T_0 f)^T = f^T, (T_1 f)^T = f^T S^T, (T_k f)^T = 2 (T_{k-1}f)^T S^T - (T_{k-2}f)^T
        outs = [f0]
        if cheb_k > 1:
            outs.append(jnp.dot(f0, s_t, preferred_element_type=jnp.float32))
        for _ in range(2, cheb_k):
            outs.append(
                2.0 * jnp.dot(outs[-1], s_t, preferred_element_type=jnp.float32)
                - outs[-2])
        return outs

    def gconv(blocks, w, bias, o_dim):
        # blocks: feature blocks totalling K*Cin rows; w: (D*o_dim, K*Cin) bf16
        feats = jnp.concatenate(blocks, axis=0).astype(jnp.bfloat16)  # (K*Cin, N)
        y = jnp.dot(w, feats, preferred_element_type=jnp.float32)     # (D*o_dim, N) f32
        acc = bias                                                    # (o_dim, N)  f32
        for d in range(embed_dim):            # static unroll; embed_dim is small
            acc = acc + e_t[d:d + 1, :] * y[d * o_dim:(d + 1) * o_dim, :]
        return acc

    # ---- GRU-style cell -----------------------------------------------------
    dxs = diffuse(xs)                                                 # K x (Cin, N)
    zr = jax.nn.sigmoid(gconv(dxs, wg_ref[...], bg_ref[...], 2 * hidden))
    z = zr[:hidden, :]
    r = zr[hidden:, :]

    dzs = diffuse(z * st)                                             # K x (H, N)
    cand = []
    for k in range(cheb_k):                   # reuse diffused x part of [x | state]
        cand.append(dxs[k][:dim_in, :])
        cand.append(dzs[k])
    hc = jnp.tanh(gconv(cand, wu_ref[...], bu_ref[...], hidden))      # (H, N)

    h_ref[...] = (r * st + (1.0 - r) * hc).astype(h_ref.dtype)


def prepare_kernel_params(p, node_embeddings):
    """Torch-layout pools + embeddings -> grid-invariant kernel tensors."""
    E = node_embeddings.astype(jnp.float32)                           # (N, D)

    def flat(wp):
        # (D, K, Cin, O) -> (D*O, K*Cin) bf16 ; row d*O+o, col k*Cin+c = wp[d,k,c,o]
        D, K, Cin, O = wp.shape
        w = jnp.transpose(wp.astype(jnp.float32), (0, 3, 1, 2)).reshape(D * O, K * Cin)
        return w.astype(jnp.bfloat16)

    # adaptive adjacency (grid-invariant -> hoisted): softmax(relu(E E^T), dim=1)
    a = jax.nn.relu(jnp.einsum('nd,md->nm', E, E, precision='highest'))
    s = jax.nn.softmax(a, axis=1)
    return dict(
        s_t=s.T,                                                      # (N, N) f32
        e_t=E.T,                                                      # (D, N) f32
        wg=flat(p['Wg']),                                             # (D*2H, K*Cin) bf16
        wu=flat(p['Wu']),                                             # (D*H,  K*Cin) bf16
        bg_t=jnp.matmul(E, p['bg'].astype(jnp.float32), precision='highest').T,  # (2H, N)
        bu_t=jnp.matmul(E, p['bu'].astype(jnp.float32), precision='highest').T,  # (H, N)
    )


def agcrn_cell_forward(x, state, kern_params, *, cheb_k):
    """x: [B, N, dim_in], state: [B, N, H] -> h: [B, N, H]."""
    B, N, Din = x.shape
    H = state.shape[-1]
    Cin = Din + H
    D = kern_params['e_t'].shape[0]

    # [x | state] transposed to (channels, nodes) -- wrapper-side plumbing only.
    xs_t = jnp.transpose(
        jnp.concatenate([x.astype(jnp.float32), state.astype(jnp.float32)], -1),
        (0, 2, 1))                                                    # (B, Cin, N)

    kernel = functools.partial(_agcrn_cell_kernel, dim_in=Din, hidden=H,
                               cheb_k=cheb_k, embed_dim=D)

    def resident(arr):
        nd = arr.ndim
        return pl.BlockSpec(arr.shape, lambda b, _nd=nd: (0,) * _nd)

    p = kern_params
    out = pl.pallas_call(
        kernel,
        out_shape=jax.ShapeDtypeStruct((B, H, N), jnp.float32),
        grid=(B,),                              # batch = pipelined, parallel grid axis
        in_specs=[pl.BlockSpec((None, Cin, N), lambda b: (b, 0, 0)),
                  resident(p['s_t']), resident(p['e_t']),
                  resident(p['wg']), resident(p['wu']),
                  resident(p['bg_t']), resident(p['bu_t'])],
        out_specs=pl.BlockSpec((None, H, N), lambda b: (b, 0, 0)),
        compiler_params=pltpu.CompilerParams(
            dimension_semantics=("parallel",),
            vmem_limit_bytes=32 * 1024 * 1024),
    )(xs_t, p['s_t'], p['e_t'], p['wg'], p['wu'], p['bg_t'], p['bu_t'])

    return jnp.transpose(out, (0, 2, 1))                              # (B, N, H)


# ---------------- pure-JAX reference mirroring the PyTorch forward ----------
def _avwgcn_ref(x, E, weights_pool, bias_pool, cheb_k):
    N = E.shape[0]
    supports = jax.nn.softmax(jax.nn.relu(
        jnp.einsum('nd,md->nm', E, E, precision='highest')), axis=1)
    support_set = [jnp.eye(N, dtype=x.dtype), supports]
    for _ in range(2, cheb_k):
        support_set.append(
            2.0 * jnp.matmul(supports, support_set[-1], precision='highest')
            - support_set[-2])
    S = jnp.stack(support_set, axis=0)                                # (K, N, N)
    weights = jnp.einsum('nd,dkio->nkio', E, weights_pool, precision='highest')
    bias = jnp.matmul(E, bias_pool, precision='highest')              # (N, O)
    x_g = jnp.einsum('knm,bmc->bknc', S, x, precision='highest')
    x_g = jnp.transpose(x_g, (0, 2, 1, 3))                            # (B, N, K, Cin)
    return jnp.einsum('bnki,nkio->bno', x_g, weights,
                      precision='highest') + bias[None]


def agcrn_cell_ref(x, state, E, p, cheb_k, hidden):
    xs = jnp.concatenate([x, state], axis=-1)
    zr = jax.nn.sigmoid(_avwgcn_ref(xs, E, p['Wg'], p['bg'], cheb_k))
    z, r = zr[..., :hidden], zr[..., hidden:]
    cand = jnp.concatenate([x, z * state], axis=-1)
    hc = jnp.tanh(_avwgcn_ref(cand, E, p['Wu'], p['bu'], cheb_k))
    return r * state + (1.0 - r) * hc


if __name__ == "__main__":
    B, N, Din, H, K, D = 2, 16, 4, 32, 3, 8   # batch, nodes, dim_in, hidden, cheb_k, embed
    Cin = Din + H
    key = jax.random.PRNGKey(0)
    kx, ks, ke, k1, k2, k3, k4 = jax.random.split(key, 7)
    x = jax.random.normal(kx, (B, N, Din), jnp.float32)
    state = jax.random.normal(ks, (B, N, H), jnp.float32)
    E = 0.5 * jax.random.normal(ke, (N, D), jnp.float32)
    torch_p = dict(
        Wg=0.05 * jax.random.normal(k1, (D, K, Cin, 2 * H), jnp.float32),
        bg=0.05 * jax.random.normal(k2, (D, 2 * H), jnp.float32),
        Wu=0.05 * jax.random.normal(k3, (D, K, Cin, H), jnp.float32),
        bu=0.05 * jax.random.normal(k4, (D, H), jnp.float32),
    )
    kern_p = prepare_kernel_params(torch_p, E)

    h = jax.block_until_ready(agcrn_cell_forward(x, state, kern_p, cheb_k=K))
    ref = jax.block_until_ready(agcrn_cell_ref(x, state, E, torch_p, K, H))

    assert h.shape == (B, N, H), h.shape
    # Tolerance accounts for bf16 MXU operands in the pooled matmuls
    # (f32 accumulation); all diffusion / softmax / GRU math stays f32.
    np.testing.assert_allclose(np.asarray(h), np.asarray(ref), rtol=1e-2, atol=1e-2)
    print("KERNEL_OK")
</pallas_src>

<mosaic_0001>
module attributes {stable_mosaic.version = 11 : i64} {
  func.func @_agcrn_cell_kernel(%arg0: i32, %arg1: memref<1x36x16xf32, #tpu.memory_space<vmem>>, %arg2: memref<16x16xf32, #tpu.memory_space<vmem>>, %arg3: memref<8x16xf32, #tpu.memory_space<vmem>>, %arg4: memref<512x108xbf16, #tpu.memory_space<vmem>>, %arg5: memref<256x108xbf16, #tpu.memory_space<vmem>>, %arg6: memref<64x16xf32, #tpu.memory_space<vmem>>, %arg7: memref<32x16xf32, #tpu.memory_space<vmem>>, %arg8: memref<1x32x16xf32, #tpu.memory_space<vmem>>) attributes {dimension_semantics = [#tpu.dimension_semantics<parallel>], iteration_bounds = array<i64: 2>, scalar_prefetch = 0 : i64, scratch_operands = 0 : i64, tpu.core_type = #tpu.core_type<tc>, window_params = [{transform_indices = @transform_0, window_bounds = array<i64: 1, 36, 16>}, {pipeline_mode = #tpu.pipeline_mode<synchronous>, transform_indices = @transform_1, window_bounds = array<i64: 16, 16>}, {pipeline_mode = #tpu.pipeline_mode<synchronous>, transform_indices = @transform_2, window_bounds = array<i64: 8, 16>}, {pipeline_mode = #tpu.pipeline_mode<synchronous>, transform_indices = @transform_3, window_bounds = array<i64: 512, 108>}, {pipeline_mode = #tpu.pipeline_mode<synchronous>, transform_indices = @transform_4, window_bounds = array<i64: 256, 108>}, {pipeline_mode = #tpu.pipeline_mode<synchronous>, transform_indices = @transform_5, window_bounds = array<i64: 64, 16>}, {pipeline_mode = #tpu.pipeline_mode<synchronous>, transform_indices = @transform_6, window_bounds = array<i64: 32, 16>}, {transform_indices = @transform_7, window_bounds = array<i64: 1, 32, 16>}]} {
    %c0 = arith.constant 0 : index
    %c0_0 = arith.constant 0 : index
    %c0_1 = arith.constant 0 : index
    %0 = vector.load %arg1[%c0, %c0_0, %c0_1] : memref<1x36x16xf32, #tpu.memory_space<vmem>>, vector<1x36x16xf32>
    %1 = vector.shape_cast %0 : vector<1x36x16xf32> to vector<36x16xf32>
    %2 = vector.extract_strided_slice %1 {offsets = [4, 0], sizes = [32, 16], strides = [1, 1]} : vector<36x16xf32> to vector<32x16xf32>
    %c0_2 = arith.constant 0 : index
    %c0_3 = arith.constant 0 : index
    %3 = vector.load %arg2[%c0_2, %c0_3] : memref<16x16xf32, #tpu.memory_space<vmem>>, vector<16x16xf32>
    %c0_4 = arith.constant 0 : index
    %c0_5 = arith.constant 0 : index
    %4 = vector.load %arg3[%c0_4, %c0_5] : memref<8x16xf32, #tpu.memory_space<vmem>>, vector<8x16xf32>
    %cst = arith.constant dense<0.000000e+00> : vector<36x16xf32>
    %5 = tpu.matmul %1, %3, %cst {dimension_numbers = #tpu.dot_dimension_numbers<[1], [0], [0], [1], [0, 0, 1, 1], [], []>} : vector<36x16xf32>, vector<16x16xf32>, vector<36x16xf32> -> vector<36x16xf32>
    %cst_6 = arith.constant dense<0.000000e+00> : vector<36x16xf32>
    %6 = tpu.matmul %5, %3, %cst_6 {dimension_numbers = #tpu.dot_dimension_numbers<[1], [0], [0], [1], [0, 0, 1, 1], [], []>} : vector<36x16xf32>, vector<16x16xf32>, vector<36x16xf32> -> vector<36x16xf32>
    %cst_7 = arith.constant 2.000000e+00 : f32
    %7 = vector.broadcast %cst_7 : f32 to vector<36x16xf32>
    %8 = arith.mulf %7, %6 : vector<36x16xf32>
    %9 = arith.subf %8, %1 : vector<36x16xf32>
    %c0_8 = arith.constant 0 : index
    %c0_9 = arith.constant 0 : index
    %10 = vector.load %arg4[%c0_8, %c0_9] : memref<512x108xbf16, #tpu.memory_space<vmem>>, vector<512x108xbf16>
    %c0_10 = arith.constant 0 : index
    %c0_11 = arith.constant 0 : index
    %11 = vector.load %arg6[%c0_10, %c0_11] : memref<64x16xf32, #tpu.memory_space<vmem>>, vector<64x16xf32>
    %12 = tpu.concatenate %1, %5, %9 in 0 : vector<36x16xf32>, vector<36x16xf32>, vector<36x16xf32> -> vector<108x16xf32>
    %13 = arith.truncf %12 : vector<108x16xf32> to vector<108x16xbf16>
    %cst_12 = arith.constant dense<0.000000e+00> : vector<512x16xf32>
    %14 = tpu.matmul %10, %13, %cst_12 {dimension_numbers = #tpu.dot_dimension_numbers<[1], [0], [0], [1], [0, 0, 1, 1], [], []>} : vector<512x108xbf16>, vector<108x16xbf16>, vector<512x16xf32> -> vector<512x16xf32>
    %15 = vector.extract_strided_slice %4 {offsets = [0, 0], sizes = [1, 16], strides = [1, 1]} : vector<8x16xf32> to vector<1x16xf32>
    %16 = vector.extract_strided_slice %14 {offsets = [0, 0], sizes = [64, 16], strides = [1, 1]} : vector<512x16xf32> to vector<64x16xf32>
    %17 = vector.broadcast %15 : vector<1x16xf32> to vector<64x16xf32>
    %18 = arith.mulf %17, %16 : vector<64x16xf32>
    %19 = arith.addf %11, %18 : vector<64x16xf32>
    %20 = vector.extract_strided_slice %4 {offsets = [1, 0], sizes = [1, 16], strides = [1, 1]} : vector<8x16xf32> to vector<1x16xf32>
    %21 = vector.extract_strided_slice %14 {offsets = [64, 0], sizes = [64, 16], strides = [1, 1]} : vector<512x16xf32> to vector<64x16xf32>
    %22 = vector.broadcast %20 : vector<1x16xf32> to vector<64x16xf32>
    %23 = arith.mulf %22, %21 : vector<64x16xf32>
    %24 = arith.addf %19, %23 : vector<64x16xf32>
    %25 = vector.extract_strided_slice %4 {offsets = [2, 0], sizes = [1, 16], strides = [1, 1]} : vector<8x16xf32> to vector<1x16xf32>
    %26 = vector.extract_strided_slice %14 {offsets = [128, 0], sizes = [64, 16], strides = [1, 1]} : vector<512x16xf32> to vector<64x16xf32>
    %27 = vector.broadcast %25 : vector<1x16xf32> to vector<64x16xf32>
    %28 = arith.mulf %27, %26 : vector<64x16xf32>
    %29 = arith.addf %24, %28 : vector<64x16xf32>
    %30 = vector.extract_strided_slice %4 {offsets = [3, 0], sizes = [1, 16], strides = [1, 1]} : vector<8x16xf32> to vector<1x16xf32>
    %31 = vector.extract_strided_slice %14 {offsets = [192, 0], sizes = [64, 16], strides = [1, 1]} : vector<512x16xf32> to vector<64x16xf32>
    %32 = vector.broadcast %30 : vector<1x16xf32> to vector<64x16xf32>
    %33 = arith.mulf %32, %31 : vector<64x16xf32>
    %34 = arith.addf %29, %33 : vector<64x16xf32>
    %35 = vector.extract_strided_slice %4 {offsets = [4, 0], sizes = [1, 16], strides = [1, 1]} : vector<8x16xf32> to vector<1x16xf32>
    %36 = vector.extract_strided_slice %14 {offsets = [256, 0], sizes = [64, 16], strides = [1, 1]} : vector<512x16xf32> to vector<64x16xf32>
    %37 = vector.broadcast %35 : vector<1x16xf32> to vector<64x16xf32>
    %38 = arith.mulf %37, %36 : vector<64x16xf32>
    %39 = arith.addf %34, %38 : vector<64x16xf32>
    %40 = vector.extract_strided_slice %4 {offsets = [5, 0], sizes = [1, 16], strides = [1, 1]} : vector<8x16xf32> to vector<1x16xf32>
    %41 = vector.extract_strided_slice %14 {offsets = [320, 0], sizes = [64, 16], strides = [1, 1]} : vector<512x16xf32> to vector<64x16xf32>
    %42 = vector.broadcast %40 : vector<1x16xf32> to vector<64x16xf32>
    %43 = arith.mulf %42, %41 : vector<64x16xf32>
    %44 = arith.addf %39, %43 : vector<64x16xf32>
    %45 = vector.extract_strided_slice %4 {offsets = [6, 0], sizes = [1, 16], strides = [1, 1]} : vector<8x16xf32> to vector<1x16xf32>
    %46 = vector.extract_strided_slice %14 {offsets = [384, 0], sizes = [64, 16], strides = [1, 1]} : vector<512x16xf32> to vector<64x16xf32>
    %47 = vector.broadcast %45 : vector<1x16xf32> to vector<64x16xf32>
    %48 = arith.mulf %47, %46 : vector<64x16xf32>
    %49 = arith.addf %44, %48 : vector<64x16xf32>
    %50 = vector.extract_strided_slice %4 {offsets = [7, 0], sizes = [1, 16], strides = [1, 1]} : vector<8x16xf32> to vector<1x16xf32>
    %51 = vector.extract_strided_slice %14 {offsets = [448, 0], sizes = [64, 16], strides = [1, 1]} : vector<512x16xf32> to vector<64x16xf32>
    %52 = vector.broadcast %50 : vector<1x16xf32> to vector<64x16xf32>
    %53 = arith.mulf %52, %51 : vector<64x16xf32>
    %54 = arith.addf %49, %53 : vector<64x16xf32>
    %55 = arith.negf %54 : vector<64x16xf32>
    %56 = math.exp %55 : vector<64x16xf32>
    %cst_13 = arith.constant 1.000000e+00 : f32
    %57 = vector.broadcast %cst_13 : f32 to vector<64x16xf32>
    %58 = arith.addf %57, %56 : vector<64x16xf32>
    %59 = arith.divf %57, %58 : vector<64x16xf32>
    %60 = vector.extract_strided_slice %59 {offsets = [0, 0], sizes = [32, 16], strides = [1, 1]} : vector<64x16xf32> to vector<32x16xf32>
    %61 = vector.extract_strided_slice %59 {offsets = [32, 0], sizes = [32, 16], strides = [1, 1]} : vector<64x16xf32> to vector<32x16xf32>
    %62 = arith.mulf %60, %2 : vector<32x16xf32>
    %cst_14 = arith.constant dense<0.000000e+00> : vector<32x16xf32>
    %63 = tpu.matmul %62, %3, %cst_14 {dimension_numbers = #tpu.dot_dimension_numbers<[1], [0], [0], [1], [0, 0, 1, 1], [], []>} : vector<32x16xf32>, vector<16x16xf32>, vector<32x16xf32> -> vector<32x16xf32>
    %cst_15 = arith.constant dense<0.000000e+00> : vector<32x16xf32>
    %64 = tpu.matmul %63, %3, %cst_15 {dimension_numbers = #tpu.dot_dimension_numbers<[1], [0], [0], [1], [0, 0, 1, 1], [], []>} : vector<32x16xf32>, vector<16x16xf32>, vector<32x16xf32> -> vector<32x16xf32>
    %cst_16 = arith.constant 2.000000e+00 : f32
    %65 = vector.broadcast %cst_16 : f32 to vector<32x16xf32>
    %66 = arith.mulf %65, %64 : vector<32x16xf32>
    %67 = arith.subf %66, %62 : vector<32x16xf32>
    %68 = vector.extract_strided_slice %1 {offsets = [0, 0], sizes = [4, 16], strides = [1, 1]} : vector<36x16xf32> to vector<4x16xf32>
    %69 = vector.extract_strided_slice %5 {offsets = [0, 0], sizes = [4, 16], strides = [1, 1]} : vector<36x16xf32> to vector<4x16xf32>
    %70 = vector.extract_strided_slice %9 {offsets = [0, 0], sizes = [4, 16], strides = [1, 1]} : vector<36x16xf32> to vector<4x16xf32>
    %c0_17 = arith.constant 0 : index
    %c0_18 = arith.constant 0 : index
    %71 = vector.load %arg5[%c0_17, %c0_18] : memref<256x108xbf16, #tpu.memory_space<vmem>>, vector<256x108xbf16>
    %c0_19 = arith.constant 0 : index
    %c0_20 = arith.constant 0 : index
    %72 = vector.load %arg7[%c0_19, %c0_20] : memref<32x16xf32, #tpu.memory_space<vmem>>, vector<32x16xf32>
    %73 = tpu.concatenate %68, %62, %69, %63, %70, %67 in 0 : vector<4x16xf32>, vector<32x16xf32>, vector<4x16xf32>, vector<32x16xf32>, vector<4x16xf32>, vector<32x16xf32> -> vector<108x16xf32>
    %74 = arith.truncf %73 : vector<108x16xf32> to vector<108x16xbf16>
    %cst_21 = arith.constant dense<0.000000e+00> : vector<256x16xf32>
    %75 = tpu.matmul %71, %74, %cst_21 {dimension_numbers = #tpu.dot_dimension_numbers<[1], [0], [0], [1], [0, 0, 1, 1], [], []>} : vector<256x108xbf16>, vector<108x16xbf16>, vector<256x16xf32> -> vector<256x16xf32>
    %76 = vector.extract_strided_slice %4 {offsets = [0, 0], sizes = [1, 16], strides = [1, 1]} : vector<8x16xf32> to vector<1x16xf32>
    %77 = vector.extract_strided_slice %75 {offsets = [0, 0], sizes = [32, 16], strides = [1, 1]} : vector<256x16xf32> to vector<32x16xf32>
    %78 = vector.broadcast %76 : vector<1x16xf32> to vector<32x16xf32>
    %79 = arith.mulf %78, %77 : vector<32x16xf32>
    %80 = arith.addf %72, %79 : vector<32x16xf32>
    %81 = vector.extract_strided_slice %4 {offsets = [1, 0], sizes = [1, 16], strides = [1, 1]} : vector<8x16xf32> to vector<1x16xf32>
    %82 = vector.extract_strided_slice %75 {offsets = [32, 0], sizes = [32, 16], strides = [1, 1]} : vector<256x16xf32> to vector<32x16xf32>
    %83 = vector.broadcast %81 : vector<1x16xf32> to vector<32x16xf32>
    %84 = arith.mulf %83, %82 : vector<32x16xf32>
    %85 = arith.addf %80, %84 : vector<32x16xf32>
    %86 = vector.extract_strided_slice %4 {offsets = [2, 0], sizes = [1, 16], strides = [1, 1]} : vector<8x16xf32> to vector<1x16xf32>
    %87 = vector.extract_strided_slice %75 {offsets = [64, 0], sizes = [32, 16], strides = [1, 1]} : vector<256x16xf32> to vector<32x16xf32>
    %88 = vector.broadcast %86 : vector<1x16xf32> to vector<32x16xf32>
    %89 = arith.mulf %88, %87 : vector<32x16xf32>
    %90 = arith.addf %85, %89 : vector<32x16xf32>
    %91 = vector.extract_strided_slice %4 {offsets = [3, 0], sizes = [1, 16], strides = [1, 1]} : vector<8x16xf32> to vector<1x16xf32>
    %92 = vector.extract_strided_slice %75 {offsets = [96, 0], sizes = [32, 16], strides = [1, 1]} : vector<256x16xf32> to vector<32x16xf32>
    %93 = vector.broadcast %91 : vector<1x16xf32> to vector<32x16xf32>
    %94 = arith.mulf %93, %92 : vector<32x16xf32>
    %95 = arith.addf %90, %94 : vector<32x16xf32>
    %96 = vector.extract_strided_slice %4 {offsets = [4, 0], sizes = [1, 16], strides = [1, 1]} : vector<8x16xf32> to vector<1x16xf32>
    %97 = vector.extract_strided_slice %75 {offsets = [128, 0], sizes = [32, 16], strides = [1, 1]} : vector<256x16xf32> to vector<32x16xf32>
    %98 = vector.broadcast %96 : vector<1x16xf32> to vector<32x16xf32>
    %99 = arith.mulf %98, %97 : vector<32x16xf32>
    %100 = arith.addf %95, %99 : vector<32x16xf32>
    %101 = vector.extract_strided_slice %4 {offsets = [5, 0], sizes = [1, 16], strides = [1, 1]} : vector<8x16xf32> to vector<1x16xf32>
    %102 = vector.extract_strided_slice %75 {offsets = [160, 0], sizes = [32, 16], strides = [1, 1]} : vector<256x16xf32> to vector<32x16xf32>
    %103 = vector.broadcast %101 : vector<1x16xf32> to vector<32x16xf32>
    %104 = arith.mulf %103, %102 : vector<32x16xf32>
    %105 = arith.addf %100, %104 : vector<32x16xf32>
    %106 = vector.extract_strided_slice %4 {offsets = [6, 0], sizes = [1, 16], strides = [1, 1]} : vector<8x16xf32> to vector<1x16xf32>
    %107 = vector.extract_strided_slice %75 {offsets = [192, 0], sizes = [32, 16], strides = [1, 1]} : vector<256x16xf32> to vector<32x16xf32>
    %108 = vector.broadcast %106 : vector<1x16xf32> to vector<32x16xf32>
    %109 = arith.mulf %108, %107 : vector<32x16xf32>
    %110 = arith.addf %105, %109 : vector<32x16xf32>
    %111 = vector.extract_strided_slice %4 {offsets = [7, 0], sizes = [1, 16], strides = [1, 1]} : vector<8x16xf32> to vector<1x16xf32>
    %112 = vector.extract_strided_slice %75 {offsets = [224, 0], sizes = [32, 16], strides = [1, 1]} : vector<256x16xf32> to vector<32x16xf32>
    %113 = vector.broadcast %111 : vector<1x16xf32> to vector<32x16xf32>
    %114 = arith.mulf %113, %112 : vector<32x16xf32>
    %115 = arith.addf %110, %114 : vector<32x16xf32>
    %116 = math.tanh %115 : vector<32x16xf32>
    %117 = arith.mulf %61, %2 : vector<32x16xf32>
    %cst_22 = arith.constant 1.000000e+00 : f32
    %118 = vector.broadcast %cst_22 : f32 to vector<32x16xf32>
    %119 = arith.subf %118, %61 : vector<32x16xf32>
    %120 = arith.mulf %119, %116 : vector<32x16xf32>
    %121 = arith.addf %117, %120 : vector<32x16xf32>
    %c0_23 = arith.constant 0 : index
    %c0_24 = arith.constant 0 : index
    %c0_25 = arith.constant 0 : index
    %122 = vector.load %arg8[%c0_23, %c0_24, %c0_25] : memref<1x32x16xf32, #tpu.memory_space<vmem>>, vector<1x32x16xf32>
    %123 = vector.shape_cast %122 : vector<1x32x16xf32> to vector<32x16xf32>
    %124 = vector.shape_cast %121 : vector<32x16xf32> to vector<1x32x16xf32>
    tpu.vector_store %arg8[%c0_23, %c0_24, %c0_25], %124 {strides = array<i32>} : memref<1x32x16xf32, #tpu.memory_space<vmem>>, vector<1x32x16xf32>,
    return
  }
  func.func @transform_0(%arg0: i32) -> (i32, i32, i32) {
    %c0_i32 = arith.constant 0 : i32
    %c0_i32_0 = arith.constant 0 : i32
    %c0_i32_1 = arith.constant 0 : i32
    return %arg0, %c0_i32, %c0_i32_0 : i32, i32, i32
  }
  func.func @transform_1(%arg0: i32) -> (i32, i32) {
    %c0_i32 = arith.constant 0 : i32
    %c0_i32_0 = arith.constant 0 : i32
    %c0_i32_1 = arith.constant 0 : i32
    return %c0_i32, %c0_i32_0 : i32, i32
  }
  func.func @transform_2(%arg0: i32) -> (i32, i32) {
    %c0_i32 = arith.constant 0 : i32
    %c0_i32_0 = arith.constant 0 : i32
    %c0_i32_1 = arith.constant 0 : i32
    return %c0_i32, %c0_i32_0 : i32, i32
  }
  func.func @transform_3(%arg0: i32) -> (i32, i32) {
    %c0_i32 = arith.constant 0 : i32
    %c0_i32_0 = arith.constant 0 : i32
    %c0_i32_1 = arith.constant 0 : i32
    return %c0_i32, %c0_i32_0 : i32, i32
  }
  func.func @transform_4(%arg0: i32) -> (i32, i32) {
    %c0_i32 = arith.constant 0 : i32
    %c0_i32_0 = arith.constant 0 : i32
    %c0_i32_1 = arith.constant 0 : i32
    return %c0_i32, %c0_i32_0 : i32, i32
  }
  func.func @transform_5(%arg0: i32) -> (i32, i32) {
    %c0_i32 = arith.constant 0 : i32
    %c0_i32_0 = arith.constant 0 : i32
    %c0_i32_1 = arith.constant 0 : i32
    return %c0_i32, %c0_i32_0 : i32, i32
  }
  func.func @transform_6(%arg0: i32) -> (i32, i32) {
    %c0_i32 = arith.constant 0 : i32
    %c0_i32_0 = arith.constant 0 : i32
    %c0_i32_1 = arith.constant 0 : i32
    return %c0_i32, %c0_i32_0 : i32, i32
  }
  func.func @transform_7(%arg0: i32) -> (i32, i32, i32) {
    %c0_i32 = arith.constant 0 : i32
    %c0_i32_0 = arith.constant 0 : i32
    %c0_i32_1 = arith.constant 0 : i32
    return %arg0, %c0_i32, %c0_i32_0 : i32, i32, i32
  }
}

</mosaic_0001>

<llo_original>
// kernel: tpu_custom_call.1
$region0: #{tpu_custom_call.1}
  #allocation0 [shape = 'u32[]', space=smem, size = 0x4, offset = 0x4, fixed_abs, tag = 'smem constant byte address 0x4 - core index']
  #allocation1 [shape = 'u32[144,128]{1,0:T(1,128)}', space=vmem, size = 0x12000, scoped, tag = 'internal scratch']
  %s0 = inlined_call_operand.vmem [shape: f32[2,36,16], index: 0, kind: input, shape index: {}]
  %s1 = inlined_call_operand.vmem [shape: f32[16,16], index: 1, kind: input, shape index: {}]
  %s2 = inlined_call_operand.vmem [shape: f32[8,16], index: 2, kind: input, shape index: {}]
  %s3 = inlined_call_operand.vmem [shape: bf16[512,108], index: 3, kind: input, shape index: {}]
  %s4 = inlined_call_operand.vmem [shape: bf16[256,108], index: 4, kind: input, shape index: {}]
  %s5 = inlined_call_operand.vmem [shape: f32[64,16], index: 5, kind: input, shape index: {}]
  %s6 = inlined_call_operand.vmem [shape: f32[32,16], index: 6, kind: input, shape index: {}]
  %s7 = inlined_call_operand.vmem [shape: f32[2,32,16], index: 7, kind: output, shape index: {}]
  %s8 = sld [smem:[#allocation0]]
  $region61: #{tpu_custom_call.1} parent=0
    _
  %s10 = ssub.s32 1, %s8
  %s11 = scalar_select 0, %s10, %s8
  loop: start=0, step=1, limit=4
  $region2: #{tpu_custom_call.1} parent=0 // loop_pre_header
    _
  $region3: #{tpu_custom_call.1} parent=0 // loop_header
    %s13 = sphi 0, %s17
    %p14 = scmp.ge.s32.totalorder %s13, 4
    %s23 = sphi 0, %s25
    %s26 = sphi 0, %s23
    %s27 = sphi 0, %s26
    %s43 = sphi 0, %s27
    %s47 = sphi 0, %s47
    %s49 = sphi 0, %s47
    %s50 = sphi 0, %s49
    %s64 = sphi 0, %s50
    %s68 = sphi 0, %s68
    %s70 = sphi 0, %s68
    %s71 = sphi 0, %s70
    %s85 = sphi 0, %s71
    %s89 = sphi 0, %s89
    %s91 = sphi 0, %s89
    %s92 = sphi 0, %s91
    %s106 = sphi 0, %s92
    %s110 = sphi 0, %s110
    %s112 = sphi 0, %s110
    %s113 = sphi 0, %s112
    %s127 = sphi 0, %s113
    %s131 = sphi 0, %s131
    %s133 = sphi 0, %s131
    %s134 = sphi 0, %s133
    %s148 = sphi 0, %s134
    %s152 = sphi 0, %s152
    %s154 = sphi 0, %s152
    %s155 = sphi 0, %s154
    %s169 = sphi 0, %s155
    %s175 = sphi 0, %s177
    %s178 = sphi 0, %s175
    %s179 = sphi 0, %s178
    %s195 = sphi 0, %s179
  $region4: #{tpu_custom_call.1} parent=0 // loop_header_branch
    %16 = sbr.rel (%p14) target = $region8
  $region5: #{tpu_custom_call.1} parent=0 // loop_body
    %s18 = ssub.s32 %s13, 1
    %s19 = ssub.s32 %s13, 2
    %s20 = sadd.s32 %s13, 1
    %s21 = ssub.s32 %s13, %s20
    %p22 = scmp.eq.s32.totalorder %s21, 0
    %s24 = sadd.s32 %s23, 1
    %s25 = scalar_select %p22, %s23, %s24
    %p28 = pneg %p22
    %p29 = scmp.eq.s32.totalorder %s13, 1
    %p30 = por %p28, %p29
    %p31 = scmp.ne.s32.totalorder %s23, %s26
    %p32 = scmp.eq.s32.totalorder %s13, 0
    %p33 = por %p31, %p32
    %p34 = scmp.ne.s32.totalorder %s23, %s26
    %p35 = scmp.eq.s32.totalorder %s18, 1
    %p36 = por %p34, %p35
    %p37 = scmp.ne.s32.totalorder %s26, %s27
    %p38 = scmp.eq.s32.totalorder %s18, 0
    %p39 = por %p37, %p38
    %p40 = scmp.ne.s32.totalorder %s26, %s27
    %p41 = scmp.eq.s32.totalorder %s19, 1
    %p42 = por %p40, %p41
    %p44 = scmp.ne.s32.totalorder %s27, %s43
    %p45 = scmp.eq.s32.totalorder %s19, 0
    %p46 = por %p44, %p45
    %s48 = sadd.s32 %s47, 1
    %p51 = scmp.eq.s32.totalorder %s13, 1
    %p52 = scmp.ne.s32.totalorder %s47, %s49
    %p53 = scmp.eq.s32.totalorder %s13, 0
    %p54 = por %p52, %p53
    %p55 = scmp.ne.s32.totalorder %s47, %s49
    %p56 = scmp.eq.s32.totalorder %s18, 1
    %p57 = por %p55, %p56
    %p58 = scmp.ne.s32.totalorder %s49, %s50
    %p59 = scmp.eq.s32.totalorder %s18, 0
    %p60 = por %p58, %p59
    %p61 = scmp.ne.s32.totalorder %s49, %s50
    %p62 = scmp.eq.s32.totalorder %s19, 1
    %p63 = por %p61, %p62
    %p65 = scmp.ne.s32.totalorder %s50, %s64
    %p66 = scmp.eq.s32.totalorder %s19, 0
    %p67 = por %p65, %p66
    %s69 = sadd.s32 %s68, 1
    %p72 = scmp.eq.s32.totalorder %s13, 1
    %p73 = scmp.ne.s32.totalorder %s68, %s70
    %p74 = scmp.eq.s32.totalorder %s13, 0
    %p75 = por %p73, %p74
    %p76 = scmp.ne.s32.totalorder %s68, %s70
    %p77 = scmp.eq.s32.totalorder %s18, 1
    %p78 = por %p76, %p77
    %p79 = scmp.ne.s32.totalorder %s70, %s71
    %p80 = scmp.eq.s32.totalorder %s18, 0
    %p81 = por %p79, %p80
    %p82 = scmp.ne.s32.totalorder %s70, %s71
    %p83 = scmp.eq.s32.totalorder %s19, 1
    %p84 = por %p82, %p83
    %p86 = scmp.ne.s32.totalorder %s71, %s85
    %p87 = scmp.eq.s32.totalorder %s19, 0
    %p88 = por %p86, %p87
    %s90 = sadd.s32 %s89, 1
    %p93 = scmp.eq.s32.totalorder %s13, 1
    %p94 = scmp.ne.s32.totalorder %s89, %s91
    %p95 = scmp.eq.s32.totalorder %s13, 0
    %p96 = por %p94, %p95
    %p97 = scmp.ne.s32.totalorder %s89, %s91
    %p98 = scmp.eq.s32.totalorder %s18, 1
    %p99 = por %p97, %p98
    %p100 = scmp.ne.s32.totalorder %s91, %s92
    %p101 = scmp.eq.s32.totalorder %s18, 0
    %p102 = por %p100, %p101
    %p103 = scmp.ne.s32.totalorder %s91, %s92
    %p104 = scmp.eq.s32.totalorder %s19, 1
    %p105 = por %p103, %p104
    %p107 = scmp.ne.s32.totalorder %s92, %s106
    %p108 = scmp.eq.s32.totalorder %s19, 0
    %p109 = por %p107, %p108
    %s111 = sadd.s32 %s110, 1
    %p114 = scmp.eq.s32.totalorder %s13, 1
    %p115 = scmp.ne.s32.totalorder %s110, %s112
    %p116 = scmp.eq.s32.totalorder %s13, 0
    %p117 = por %p115, %p116
    %p118 = scmp.ne.s32.totalorder %s110, %s112
    %p119 = scmp.eq.s32.totalorder %s18, 1
    %p120 = por %p118, %p119
    %p121 = scmp.ne.s32.totalorder %s112, %s113
    %p122 = scmp.eq.s32.totalorder %s18, 0
    %p123 = por %p121, %p122
    %p124 = scmp.ne.s32.totalorder %s112, %s113
    %p125 = scmp.eq.s32.totalorder %s19, 1
    %p126 = por %p124, %p125
    %p128 = scmp.ne.s32.totalorder %s113, %s127
    %p129 = scmp.eq.s32.totalorder %s19, 0
    %p130 = por %p128, %p129
    %s132 = sadd.s32 %s131, 1
    %p135 = scmp.eq.s32.totalorder %s13, 1
    %p136 = scmp.ne.s32.totalorder %s131, %s133
    %p137 = scmp.eq.s32.totalorder %s13, 0
    %p138 = por %p136, %p137
    %p139 = scmp.ne.s32.totalorder %s131, %s133
    %p140 = scmp.eq.s32.totalorder %s18, 1
    %p141 = por %p139, %p140
    %p142 = scmp.ne.s32.totalorder %s133, %s134
    %p143 = scmp.eq.s32.totalorder %s18, 0
    %p144 = por %p142, %p143
    %p145 = scmp.ne.s32.totalorder %s133, %s134
    %p146 = scmp.eq.s32.totalorder %s19, 1
    %p147 = por %p145, %p146
    %p149 = scmp.ne.s32.totalorder %s134, %s148
    %p150 = scmp.eq.s32.totalorder %s19, 0
    %p151 = por %p149, %p150
    %s153 = sadd.s32 %s152, 1
    %p156 = scmp.eq.s32.totalorder %s13, 1
    %p157 = scmp.ne.s32.totalorder %s152, %s154
    %p158 = scmp.eq.s32.totalorder %s13, 0
    %p159 = por %p157, %p158
    %p160 = scmp.ne.s32.totalorder %s152, %s154
    %p161 = scmp.eq.s32.totalorder %s18, 1
    %p162 = por %p160, %p161
    %p163 = scmp.ne.s32.totalorder %s154, %s155
    %p164 = scmp.eq.s32.totalorder %s18, 0
    %p165 = por %p163, %p164
    %p166 = scmp.ne.s32.totalorder %s154, %s155
    %p167 = scmp.eq.s32.totalorder %s19, 1
    %p168 = por %p166, %p167
    %p170 = scmp.ne.s32.totalorder %s155, %s169
    %p171 = scmp.eq.s32.totalorder %s19, 0
    %p172 = por %p170, %p171
    %s173 = ssub.s32 %s13, %s20
    %p174 = scmp.eq.s32.totalorder %s173, 0
    %s176 = sadd.s32 %s175, 1
    %s177 = scalar_select %p174, %s175, %s176
    %p180 = pneg %p174
    %p181 = scmp.eq.s32.totalorder %s13, 1
    %p182 = por %p180, %p181
    %p183 = scmp.ne.s32.totalorder %s175, %s178
    %p184 = scmp.eq.s32.totalorder %s13, 0
    %p185 = por %p183, %p184
    %p186 = scmp.ne.s32.totalorder %s175, %s178
    %p187 = scmp.eq.s32.totalorder %s18, 1
    %p188 = por %p186, %p187
    %p189 = scmp.ne.s32.totalorder %s178, %s179
    %p190 = scmp.eq.s32.totalorder %s18, 0
    %p191 = por %p189, %p190
    %p192 = scmp.ne.s32.totalorder %s178, %s179
    %p193 = scmp.eq.s32.totalorder %s19, 1
    %p194 = por %p192, %p193
    %p196 = scmp.ne.s32.totalorder %s179, %s195
    %p197 = scmp.eq.s32.totalorder %s19, 0
    %p198 = por %p196, %p197
    %p199 = scmp.le.s32.totalorder 1, %s13
    %p200 = scmp.lt.s32.totalorder %s13, 3
    %p201 = pnand %p199, %p200
    %p202 = pneg %p201
    // Predicated region
    $region9: #{tpu_custom_call.1} parent=5 // pred_check
      _
    $region10: #{tpu_custom_call.1} parent=5 // pred_check_branch
      %204 = sbr.rel (%p201) target = $region12
    $region11: #{tpu_custom_call.1} parent=5 // pred_region
      %s205 = ssub.s32 %s13, 1
      // Predicated region
      $region13: #{tpu_custom_call.1} parent=11 // pred_check
        %p206 = pneg %p60
      $region14: #{tpu_custom_call.1} parent=11 // pred_check_branch
        %208 = sbr.rel (%p206) target = $region16
      $region15: #{tpu_custom_call.1} parent=11 // pred_region
        _
      $region16: #{tpu_custom_call.1} parent=11 // pred_fallthru
        _
      // Predicated region
      $region17: #{tpu_custom_call.1} parent=11 // pred_check
        %p209 = pneg %p81
      $region18: #{tpu_custom_call.1} parent=11 // pred_check_branch
        %211 = sbr.rel (%p209) target = $region20
      $region19: #{tpu_custom_call.1} parent=11 // pred_region
        _
      $region20: #{tpu_custom_call.1} parent=11 // pred_fallthru
        _
      // Predicated region
      $region21: #{tpu_custom_call.1} parent=11 // pred_check
        %p212 = pneg %p102
      $region22: #{tpu_custom_call.1} parent=11 // pred_check_branch
        %214 = sbr.rel (%p212) target = $region24
      $region23: #{tpu_custom_call.1} parent=11 // pred_region
        _
      $region24: #{tpu_custom_call.1} parent=11 // pred_fallthru
        _
      // Predicated region
      $region25: #{tpu_custom_call.1} parent=11 // pred_check
        %p215 = pneg %p123
      $region26: #{tpu_custom_call.1} parent=11 // pred_check_branch
        %217 = sbr.rel (%p215) target = $region28
      $region27: #{tpu_custom_call.1} parent=11 // pred_region
        _
      $region28: #{tpu_custom_call.1} parent=11 // pred_fallthru
        _
      // Predicated region
      $region29: #{tpu_custom_call.1} parent=11 // pred_check
        %p218 = pneg %p144
      $region30: #{tpu_custom_call.1} parent=11 // pred_check_branch
        %220 = sbr.rel (%p218) target = $region32
      $region31: #{tpu_custom_call.1} parent=11 // pred_region
        _
      $region32: #{tpu_custom_call.1} parent=11 // pred_fallthru
        _
      // Predicated region
      $region33: #{tpu_custom_call.1} parent=11 // pred_check
        %p221 = pneg %p165
      $region34: #{tpu_custom_call.1} parent=11 // pred_check_branch
        %223 = sbr.rel (%p221) target = $region36
      $region35: #{tpu_custom_call.1} parent=11 // pred_region
        _
      $region36: #{tpu_custom_call.1} parent=11 // pred_fallthru
        _
    $region12: #{tpu_custom_call.1} parent=5 // pred_fallthru
      _
    %p224 = scmp.lt.s32.totalorder %s13, 2
    // Predicated region
    $region37: #{tpu_custom_call.1} parent=5 // pred_check
      %p225 = pneg %p224
    $region38: #{tpu_custom_call.1} parent=5 // pred_check_branch
      %227 = sbr.rel (%p225) target = $region40
    $region39: #{tpu_custom_call.1} parent=5 // pred_region
      // Predicated region
      $region41: #{tpu_custom_call.1} parent=39 // pred_check
        %p228 = pneg %p33
      $region42: #{tpu_custom_call.1} parent=39 // pred_check_branch
        %230 = sbr.rel (%p228) target = $region44
      $region43: #{tpu_custom_call.1} parent=39 // pred_region
        %p231 = scmp.lt.s32.totalorder %s13, 1
        %s232 = scalar_select %p231, %s13, 1
        %s233 = smul.addr %s232, 5
        %s234 = smul.addr %s233, 8
        %s235 = scalar_lea.vmem %s0, %s234
      $region44: #{tpu_custom_call.1} parent=39 // pred_fallthru
        _
    $region40: #{tpu_custom_call.1} parent=5 // pred_fallthru
      _
    %p236 = scmp.le.s32.totalorder 1, %s13
    %p237 = scmp.lt.s32.totalorder %s13, 3
    %p238 = pnand %p236, %p237
    %p239 = pneg %p238
    // Predicated region
    $region45: #{tpu_custom_call.1} parent=5 // pred_check
      _
    $region46: #{tpu_custom_call.1} parent=5 // pred_check_branch
      %241 = sbr.rel (%p238) target = $region48
    $region47: #{tpu_custom_call.1} parent=5 // pred_region
      %s242 = ssub.s32 %s13, 1
      %p243 = scmp.lt.s32.totalorder %s18, 1
      %s244 = scalar_select %p243, %s18, 1
      %s245 = smul.addr %s244, 5
      %s246 = smul.addr %s245, 8
      %s247 = scalar_lea.vmem %s0, %s246
      %p248 = pneg %p39
      %p249 = pneg %p36
      %p250 = pneg %p60
      %p251 = pneg %p57
      %p252 = pneg %p81
      %p253 = pneg %p78
      %p254 = pneg %p102
      %p255 = pneg %p99
      %p256 = pneg %p123
      %p257 = pneg %p120
      %p258 = pneg %p144
      %p259 = pneg %p141
      %p260 = pneg %p165
      %p261 = pneg %p162
      %p262 = pneg %p191
      %p263 = pneg %p188
      %p264 = scmp.lt.s32.totalorder %s18, 1
      %s265 = scalar_select %p264, %s18, 1
      %s266 = smul.addr %s265, 4
      %s267 = smul.addr %s266, 8
      %s268 = scalar_lea.vmem %s7, %s267
      %p269 = scmp.lt.s32.totalorder %s18, 1
      %s270 = scalar_select %p269, %s18, 1
      %s271 = smul.addr %s270, 5
      %s272 = smul.addr %s271, 8
      %s273 = scalar_lea.vmem %s0, %s272
      %p274 = scmp.lt.s32.totalorder %s18, 1
      %s275 = scalar_select %p274, %s18, 1
      %s276 = smul.addr %s275, 4
      %s277 = smul.addr %s276, 8
      %s278 = scalar_lea.vmem %s7, %s277
      %v280 = vld [vmem:[%s273] sm:$0xff]
      %v281 = vld [vmem:[%s273 + $0x8] sm:$0xff]
      %v282 = vld [vmem:[%s273 + $0x10] sm:$0xff]
      %v283 = vld [vmem:[%s273 + $0x18] sm:$0xff]
      %v284 = vld [vmem:[%s273 + $0x20] sm:$0xf]
      %v285 = vld [vmem:[%s1] sm:$0xff]
      %v286 = vld [vmem:[%s1 + $0x8] sm:$0xff]
      %v287 = vld [vmem:[%s2] sm:$0xff]
      %vm288 = vcmask 130048
      %v290 = vsel %vm288, %v280, 0
      %v293 = vsel %vm288, %v281, 0
      %v296 = vsel %vm288, %v282, 0
      %v299 = vsel %vm288, %v283, 0
      %v302 = vsel %vm288, %v284, 0
      %304 = vmatprep.subr.mxu0 0.0
      %305 = vmatpush1.msra.mxu0 %v285
      %306 = vmatprep.subr.mxu0 0.0
      %307 = vmatpush1.msra.mxu0 %v286
      %308 = vmatprep.subr.mxu0 0.0
      %309 = vmatpush1.msra.mxu0 0.0
      %310 = vmatprep.subr.mxu0 0.0
      %311 = vmatpush1.msra.mxu0 0.0
      %312 = vmatprep.subr.mxu0 0.0
      %313 = vmatpush1.msra.mxu0 0.0
      %314 = vmatprep.subr.mxu0 0.0
      %315 = vmatpush1.msra.mxu0 0.0
      %316 = vmatprep.subr.mxu0 0.0
      %317 = vmatpush1.msra.mxu0 0.0
      %318 = vmatprep.subr.mxu0 0.0
      %319 = vmatpush1.msra.mxu0 0.0
      %320 = vmatprep.subr.mxu0 0.0
      %321 = vmatpush1.msra.mxu0 0.0
      %322 = vmatprep.subr.mxu0 0.0
      %323 = vmatpush1.msra.mxu0 0.0
      %324 = vmatprep.subr.mxu0 0.0
      %325 = vmatpush1.msra.mxu0 0.0
      %326 = vmatprep.subr.mxu0 0.0
      %327 = vmatpush1.msra.mxu0 0.0
      %328 = vmatprep.subr.mxu0 0.0
      %329 = vmatpush1.msra.mxu0 0.0
      %330 = vmatprep.subr.mxu0 0.0
      %331 = vmatpush1.msra.mxu0 0.0
      %332 = vmatprep.subr.mxu0 0.0
      %333 = vmatpush1.msra.mxu0 0.0
      %334 = vmatprep.subr.mxu0 0.0
      %335 = vmatpush1.msra.mxu0 0.0
      %336 = vmatprep.subr.mxu0 0.0
      %337 = vmatpush1.msra.mxu0 0.0
      %338 = vmatprep.subr.mxu0 0.0
      %339 = vmatpush1.msra.mxu0 0.0
      %340 = vmatprep.subr.mxu0 0.0
      %341 = vmatpush1.msra.mxu0 0.0
      %342 = vmatprep.subr.mxu0 0.0
      %343 = vmatpush1.msra.mxu0 0.0
      %344 = vmatprep.subr.mxu0 0.0
      %345 = vmatpush1.msra.mxu0 0.0
      %346 = vmatprep.subr.mxu0 0.0
      %347 = vmatpush1.msra.mxu0 0.0
      %348 = vmatprep.subr.mxu0 0.0
      %349 = vmatpush1.msra.mxu0 0.0
      %350 = vmatprep.subr.mxu0 0.0
      %351 = vmatpush1.msra.mxu0 0.0
      %352 = vmatprep.subr.mxu0 0.0
      %353 = vmatpush1.msra.mxu0 0.0
      %354 = vmatprep.subr.mxu0 0.0
      %355 = vmatpush1.msra.mxu0 0.0
      %356 = vmatprep.subr.mxu0 0.0
      %357 = vmatpush1.msra.mxu0 0.0
      %358 = vmatprep.subr.mxu0 0.0
      %359 = vmatpush1.msra.mxu0 0.0
      %360 = vmatprep.subr.mxu0 0.0
      %361 = vmatpush1.msra.mxu0 0.0
      %362 = vmatprep.subr.mxu0 0.0
      %363 = vmatpush1.msra.mxu0 0.0
      %364 = vmatprep.subr.mxu0 0.0
      %365 = vmatpush1.msra.mxu0 0.0
      %366 = vmatprep.subr.mxu0 0.0
      %367 = vmatpush1.msra.mxu0 0.0
      %368 = vmatprep.mubr.f32.mxu0 0.0
      %369 = vmatmul.mubr.f32.gmra.mrb[0].mxu0 %v290
      %v370 = vpop.f32.mrb[0].mxu0
      %v371 = vadd.f32 0.0, %v370
      %v372 = vpop.f32.mrb[0].mxu0
      %373 = vmatprep.mubr.f32.mxu0 0.0
      %374 = vmatmul.mubr.f32.gmra.mrb[0].mxu0 %v293
      %v375 = vpop.f32.mrb[0].mxu0
      %v376 = vadd.f32 0.0, %v375
      %v377 = vpop.f32.mrb[0].mxu0
      %378 = vmatprep.mubr.f32.mxu0 0.0
      %379 = vmatmul.mubr.f32.gmra.mrb[0].mxu0 %v296
      %v380 = vpop.f32.mrb[0].mxu0
      %v381 = vadd.f32 0.0, %v380
      %v382 = vpop.f32.mrb[0].mxu0
      %383 = vmatprep.mubr.f32.mxu0 0.0
      %384 = vmatmul.mubr.f32.gmra.mrb[0].mxu0 %v299
      %v385 = vpop.f32.mrb[0].mxu0
      %v386 = vadd.f32 0.0, %v385
      %v387 = vpop.f32.mrb[0].mxu0
      %388 = vmatprep.mubr.f32.mxu0 0.0
      %389 = vmatmul.mubr.f32.gmra.mrb[0].mxu0 %v302
      %v390 = vpop.f32.mrb[0].mxu0
      %v391 = vadd.f32 0.0, %v390
      %v392 = vpop.f32.mrb[0].mxu0
      %393 = vdwg.mxu0
      %v395 = vsel %vm288, %v371, 0
      %v398 = vsel %vm288, %v376, 0
      %v401 = vsel %vm288, %v381, 0
      %v404 = vsel %vm288, %v386, 0
      %v407 = vsel %vm288, %v391, 0
      %409 = vmatprep.subr.mxu0 0.0
      %410 = vmatpush1.msra.mxu0 %v285
      %411 = vmatprep.subr.mxu0 0.0
      %412 = vmatpush1.msra.mxu0 %v286
      %413 = vmatprep.subr.mxu0 0.0
      %414 = vmatpush1.msra.mxu0 0.0
      %415 = vmatprep.subr.mxu0 0.0
      %416 = vmatpush1.msra.mxu0 0.0
      %417 = vmatprep.subr.mxu0 0.0
      %418 = vmatpush1.msra.mxu0 0.0
      %419 = vmatprep.subr.mxu0 0.0
      %420 = vmatpush1.msra.mxu0 0.0
      %421 = vmatprep.subr.mxu0 0.0
      %422 = vmatpush1.msra.mxu0 0.0
      %423 = vmatprep.subr.mxu0 0.0
      %424 = vmatpush1.msra.mxu0 0.0
      %425 = vmatprep.subr.mxu0 0.0
      %426 = vmatpush1.msra.mxu0 0.0
      %427 = vmatprep.subr.mxu0 0.0
      %428 = vmatpush1.msra.mxu0 0.0
      %429 = vmatprep.subr.mxu0 0.0
      %430 = vmatpush1.msra.mxu0 0.0
      %431 = vmatprep.subr.mxu0 0.0
      %432 = vmatpush1.msra.mxu0 0.0
      %433 = vmatprep.subr.mxu0 0.0
      %434 = vmatpush1.msra.mxu0 0.0
      %435 = vmatprep.subr.mxu0 0.0
      %436 = vmatpush1.msra.mxu0 0.0
      %437 = vmatprep.subr.mxu0 0.0
      %438 = vmatpush1.msra.mxu0 0.0
      %439 = vmatprep.subr.mxu0 0.0
      %440 = vmatpush1.msra.mxu0 0.0
      %441 = vmatprep.subr.mxu0 0.0
      %442 = vmatpush1.msra.mxu0 0.0
      %443 = vmatprep.subr.mxu0 0.0
      %444 = vmatpush1.msra.mxu0 0.0
      %445 = vmatprep.subr.mxu0 0.0
      %446 = vmatpush1.msra.mxu0 0.0
      %447 = vmatprep.subr.mxu0 0.0
      %448 = vmatpush1.msra.mxu0 0.0
      %449 = vmatprep.subr.mxu0 0.0
      %450 = vmatpush1.msra.mxu0 0.0
      %451 = vmatprep.subr.mxu0 0.0
      %452 = vmatpush1.msra.mxu0 0.0
      %453 = vmatprep.subr.mxu0 0.0
      %454 = vmatpush1.msra.mxu0 0.0
      %455 = vmatprep.subr.mxu0 0.0
      %456 = vmatpush1.msra.mxu0 0.0
      %457 = vmatprep.subr.mxu0 0.0
      %458 = vmatpush1.msra.mxu0 0.0
      %459 = vmatprep.subr.mxu0 0.0
      %460 = vmatpush1.msra.mxu0 0.0
      %461 = vmatprep.subr.mxu0 0.0
      %462 = vmatpush1.msra.mxu0 0.0
      %463 = vmatprep.subr.mxu0 0.0
      %464 = vmatpush1.msra.mxu0 0.0
      %465 = vmatprep.subr.mxu0 0.0
      %466 = vmatpush1.msra.mxu0 0.0
      %467 = vmatprep.subr.mxu0 0.0
      %468 = vmatpush1.msra.mxu0 0.0
      %469 = vmatprep.subr.mxu0 0.0
      %470 = vmatpush1.msra.mxu0 0.0
      %471 = vmatprep.subr.mxu0 0.0
      %472 = vmatpush1.msra.mxu0 0.0
      %473 = vmatprep.mubr.f32.mxu0 0.0
      %474 = vmatmul.mubr.f32.gmra.mrb[0].mxu0 %v395
      %v475 = vpop.f32.mrb[0].mxu0
      %v476 = vadd.f32 0.0, %v475
      %v477 = vpop.f32.mrb[0].mxu0
      %478 = vmatprep.mubr.f32.mxu0 0.0
      %479 = vmatmul.mubr.f32.gmra.mrb[0].mxu0 %v398
      %v480 = vpop.f32.mrb[0].mxu0
      %v481 = vadd.f32 0.0, %v480
      %v482 = vpop.f32.mrb[0].mxu0
      %483 = vmatprep.mubr.f32.mxu0 0.0
      %484 = vmatmul.mubr.f32.gmra.mrb[0].mxu0 %v401
      %v485 = vpop.f32.mrb[0].mxu0
      %v486 = vadd.f32 0.0, %v485
      %v487 = vpop.f32.mrb[0].mxu0
      %488 = vmatprep.mubr.f32.mxu0 0.0
      %489 = vmatmul.mubr.f32.gmra.mrb[0].mxu0 %v404
      %v490 = vpop.f32.mrb[0].mxu0
      %v491 = vadd.f32 0.0, %v490
      %v492 = vpop.f32.mrb[0].mxu0
      %493 = vmatprep.mubr.f32.mxu0 0.0
      %494 = vmatmul.mubr.f32.gmra.mrb[0].mxu0 %v407
      %v495 = vpop.f32.mrb[0].mxu0
      %v496 = vadd.f32 0.0, %v495
      %v497 = vpop.f32.mrb[0].mxu0
      %498 = vdwg.mxu0
      %v499 = vmul.f32 %v476, 2.0
      %v500 = vmul.f32 %v481, 2.0
      %v501 = vmul.f32 %v486, 2.0
      %v502 = vmul.f32 %v491, 2.0
      %v503 = vmul.f32 %v496, 2.0
      %v504 = vsub.f32 %v499, %v280
      %v505 = vsub.f32 %v500, %v281
      %v506 = vsub.f32 %v501, %v282
      %v507 = vsub.f32 %v502, %v283
      %v508 = vsub.f32 %v503, %v284
      %v509 = vld [vmem:[%s3] sm:$0xf]
      %v510 = vld [vmem:[%s3 + $0x4] sm:$0xf]
      %v511 = vld [vmem:[%s3 + $0x8] sm:$0xf]
      %v512 = vld [vmem:[%s3 + $0xc] sm:$0xf]
      %v513 = vld [vmem:[%s3 + $0x10] sm:$0xf]
      %v514 = vld [vmem:[%s3 + $0x14] sm:$0xf]
      %v515 = vld [vmem:[%s3 + $0x18] sm:$0xf]
      %v516 = vld [vmem:[%s3 + $0x1c] sm:$0xf]
      %v517 = vld [vmem:[%s3 + $0x20] sm:$0xf]
      %v518 = vld [vmem:[%s3 + $0x24] sm:$0xf]
      %v519 = vld [vmem:[%s3 + $0x28] sm:$0xf]
      %v520 = vld [vmem:[%s3 + $0x2c] sm:$0xf]
      %v521 = vld [vmem:[%s3 + $0x30] sm:$0xf]
      %v522 = vld [vmem:[%s3 + $0x34] sm:$0xf]
      %v523 = vld [vmem:[%s3 + $0x38] sm:$0xf]
      %v524 = vld [vmem:[%s3 + $0x3c] sm:$0xf]
      %v525 = vld [vmem:[%s3 + $0x40] sm:$0xf]
      %v526 = vld [vmem:[%s3 + $0x44] sm:$0xf]
      %v527 = vld [vmem:[%s3 + $0x48] sm:$0xf]
      %v528 = vld [vmem:[%s3 + $0x4c] sm:$0xf]
      %v529 = vld [vmem:[%s3 + $0x50] sm:$0xf]
      %v530 = vld [vmem:[%s3 + $0x54] sm:$0xf]
      %v531 = vld [vmem:[%s3 + $0x58] sm:$0xf]
      %v532 = vld [vmem:[%s3 + $0x5c] sm:$0xf]
      %v533 = vld [vmem:[%s3 + $0x60] sm:$0xf]
      %v534 = vld [vmem:[%s3 + $0x64] sm:$0xf]
      %v535 = vld [vmem:[%s3 + $0x68] sm:$0xf]
      %v536 = vld [vmem:[%s3 + $0x6c] sm:$0xf]
      %v537 = vld [vmem:[%s3 + $0x70] sm:$0xf]
      %v538 = vld [vmem:[%s3 + $0x74] sm:$0xf]
      %v539 = vld [vmem:[%s3 + $0x78] sm:$0xf]
      %v540 = vld [vmem:[%s3 + $0x7c] sm:$0xf]
      %v541 = vld [vmem:[%s3 + $0x80] sm:$0xf]
      %v542 = vld [vmem:[%s3 + $0x84] sm:$0xf]
      %v543 = vld [vmem:[%s3 + $0x88] sm:$0xf]
      %v544 = vld [vmem:[%s3 + $0x8c] sm:$0xf]
      %v545 = vld [vmem:[%s3 + $0x90] sm:$0xf]
      %v546 = vld [vmem:[%s3 + $0x94] sm:$0xf]
      %v547 = vld [vmem:[%s3 + $0x98] sm:$0xf]
      %v548 = vld [vmem:[%s3 + $0x9c] sm:$0xf]
      %v549 = vld [vmem:[%s3 + $0xa0] sm:$0xf]
      %v550 = vld [vmem:[%s3 + $0xa4] sm:$0xf]
      %v551 = vld [vmem:[%s3 + $0xa8] sm:$0xf]
      %v552 = vld [vmem:[%s3 + $0xac] sm:$0xf]
      %v553 = vld [vmem:[%s3 + $0xb0] sm:$0xf]
      %v554 = vld [vmem:[%s3 + $0xb4] sm:$0xf]
      %v555 = vld [vmem:[%s3 + $0xb8] sm:$0xf]
      %v556 = vld [vmem:[%s3 + $0xbc] sm:$0xf]
      %v557 = vld [vmem:[%s3 + $0xc0] sm:$0xf]
      %v558 = vld [vmem:[%s3 + $0xc4] sm:$0xf]
      %v559 = vld [vmem:[%s3 + $0xc8] sm:$0xf]
      %v560 = vld [vmem:[%s3 + $0xcc] sm:$0xf]
      %v561 = vld [vmem:[%s3 + $0xd0] sm:$0xf]
      %v562 = vld [vmem:[%s3 + $0xd4] sm:$0xf]
      %v563 = vld [vmem:[%s3 + $0xd8] sm:$0xf]
      %v564 = vld [vmem:[%s3 + $0xdc] sm:$0xf]
      %v565 = vld [vmem:[%s3 + $0xe0] sm:$0xf]
      %v566 = vld [vmem:[%s3 + $0xe4] sm:$0xf]
      %v567 = vld [vmem:[%s3 + $0xe8] sm:$0xf]
      %v568 = vld [vmem:[%s3 + $0xec] sm:$0xf]
      %v569 = vld [vmem:[%s3 + $0xf0] sm:$0xf]
      %v570 = vld [vmem:[%s3 + $0xf4] sm:$0xf]
      %v571 = vld [vmem:[%s3 + $0xf8] sm:$0xf]
      %v572 = vld [vmem:[%s3 + $0xfc] sm:$0xf]
      %v573 = vld [vmem:[%s5] sm:$0xff]
      %v574 = vld [vmem:[%s5 + $0x8] sm:$0xff]
      %v575 = vld [vmem:[%s5 + $0x10] sm:$0xff]
      %v576 = vld [vmem:[%s5 + $0x18] sm:$0xff]
      %v577 = vld [vmem:[%s5 + $0x20] sm:$0xff]
      %v578 = vld [vmem:[%s5 + $0x28] sm:$0xff]
      %v579 = vld [vmem:[%s5 + $0x30] sm:$0xff]
      %v580 = vld [vmem:[%s5 + $0x38] sm:$0xff]
      %vm581 = vcmask 1043456
      %v582 = vrot.slane %v371, 4
      %v583 = vrot.slane %v376, 4
      %v584 = vsel %vm581, %v582, %v583
      %v585 = vrot.slane %v381, 4
      %v586 = vsel %vm581, %v583, %v585
      %v587 = vrot.slane %v386, 4
      %v588 = vsel %vm581, %v585, %v587
      %v589 = vrot.slane %v391, 4
      %v590 = vsel %vm581, %v587, %v589
      %v596 = vsel %vm581, %v284, %v582
      %v597 = vpack.c.bf16 %v281, %v280
      %v598 = vpack.c.bf16 %v283, %v282
      %v599 = vpack.c.bf16 %v584, %v596
      %v600 = vpack.c.bf16 %v588, %v586
      %v601 = vpack.c.bf16 %v504, %v590
      %v602 = vpack.c.bf16 %v506, %v505
      %v603 = vpack.c.bf16 %v508, %v507
      %v668 = vunpack.c.l.b16 %v509
      %v669 = vunpack.c.l.b16 %v510
      %v670 = vunpack.c.l.b16 %v511
      %v671 = vunpack.c.l.b16 %v512
      %v672 = vunpack.c.l.b16 %v513
      %v673 = vunpack.c.l.b16 %v514
      %v674 = vunpack.c.l.b16 %v515
      %v675 = vunpack.c.l.b16 %v516
      %v676 = vunpack.c.l.b16 %v517
      %v677 = vunpack.c.l.b16 %v518
      %v678 = vunpack.c.l.b16 %v519
      %v679 = vunpack.c.l.b16 %v520
      %v680 = vunpack.c.l.b16 %v521
      %v681 = vunpack.c.l.b16 %v522
      %v682 = vunpack.c.l.b16 %v523
      %v683 = vunpack.c.l.b16 %v524
      %v684 = vunpack.c.l.b16 %v525
      %v685 = vunpack.c.l.b16 %v526
      %v686 = vunpack.c.l.b16 %v527
      %v687 = vunpack.c.l.b16 %v528
      %v688 = vunpack.c.l.b16 %v529
      %v689 = vunpack.c.l.b16 %v530
      %v690 = vunpack.c.l.b16 %v531
      %v691 = vunpack.c.l.b16 %v532
      %v692 = vunpack.c.l.b16 %v533
      %v693 = vunpack.c.l.b16 %v534
      %v694 = vunpack.c.l.b16 %v535
      %v695 = vunpack.c.l.b16 %v536
      %v696 = vunpack.c.l.b16 %v537
      %v697 = vunpack.c.l.b16 %v538
      %v698 = vunpack.c.l.b16 %v539
      %v699 = vunpack.c.l.b16 %v540
      %v700 = vunpack.c.l.b16 %v541
      %v701 = vunpack.c.l.b16 %v542
      %v702 = vunpack.c.l.b16 %v543
      %v703 = vunpack.c.l.b16 %v544
      %v704 = vunpack.c.l.b16 %v545
      %v705 = vunpack.c.l.b16 %v546
      %v706 = vunpack.c.l.b16 %v547
      %v707 = vunpack.c.l.b16 %v548
      %v708 = vunpack.c.l.b16 %v549
      %v709 = vunpack.c.l.b16 %v550
      %v710 = vunpack.c.l.b16 %v551
      %v711 = vunpack.c.l.b16 %v552
      %v712 = vunpack.c.l.b16 %v553
      %v713 = vunpack.c.l.b16 %v554
      %v714 = vunpack.c.l.b16 %v555
      %v715 = vunpack.c.l.b16 %v556
      %v716 = vunpack.c.l.b16 %v557
      %v717 = vunpack.c.l.b16 %v558
      %v718 = vunpack.c.l.b16 %v559
      %v719 = vunpack.c.l.b16 %v560
      %v720 = vunpack.c.l.b16 %v561
      %v721 = vunpack.c.l.b16 %v562
      %v722 = vunpack.c.l.b16 %v563
      %v723 = vunpack.c.l.b16 %v564
      %v724 = vunpack.c.l.b16 %v565
      %v725 = vunpack.c.l.b16 %v566
      %v726 = vunpack.c.l.b16 %v567
      %v727 = vunpack.c.l.b16 %v568
      %v728 = vunpack.c.l.b16 %v569
      %v729 = vunpack.c.l.b16 %v570
      %v730 = vunpack.c.l.b16 %v571
      %v731 = vunpack.c.l.b16 %v572
      %v732 = vpack.c.b16 %v669, %v668
      %v733 = vpack.c.b16 %v671, %v670
      %v734 = vpack.c.b16 %v673, %v672
      %v735 = vpack.c.b16 %v675, %v674
      %v736 = vpack.c.b16 %v677, %v676
      %v737 = vpack.c.b16 %v679, %v678
      %v738 = vpack.c.b16 %v681, %v680
      %v739 = vpack.c.b16 %v683, %v682
      %v740 = vpack.c.b16 %v685, %v684
      %v741 = vpack.c.b16 %v687, %v686
      %v742 = vpack.c.b16 %v689, %v688
      %v743 = vpack.c.b16 %v691, %v690
      %v744 = vpack.c.b16 %v693, %v692
      %v745 = vpack.c.b16 %v695, %v694
      %v746 = vpack.c.b16 %v697, %v696
      %v747 = vpack.c.b16 %v699, %v698
      %v748 = vpack.c.b16 %v701, %v700
      %v749 = vpack.c.b16 %v703, %v702
      %v750 = vpack.c.b16 %v705, %v704
      %v751 = vpack.c.b16 %v707, %v706
      %v752 = vpack.c.b16 %v709, %v708
      %v753 = vpack.c.b16 %v711, %v710
      %v754 = vpack.c.b16 %v713, %v712
      %v755 = vpack.c.b16 %v715, %v714
      %v756 = vpack.c.b16 %v717, %v716
      %v757 = vpack.c.b16 %v719, %v718
      %v758 = vpack.c.b16 %v721, %v720
      %v759 = vpack.c.b16 %v723, %v722
      %v760 = vpack.c.b16 %v725, %v724
      %v761 = vpack.c.b16 %v727, %v726
      %v762 = vpack.c.b16 %v729, %v728
      %v763 = vpack.c.b16 %v731, %v730
      %vm764 = vcmask 883712
      %v766 = vsel %vm764, %v732, 0
      %v769 = vsel %vm764, %v733, 0
      %v772 = vsel %vm764, %v734, 0
      %v775 = vsel %vm764, %v735, 0
      %v778 = vsel %vm764, %v736, 0
      %v781 = vsel %vm764, %v737, 0
      %v784 = vsel %vm764, %v738, 0
      %v787 = vsel %vm764, %v739, 0
      %v790 = vsel %vm764, %v740, 0
      %v793 = vsel %vm764, %v741, 0
      %v796 = vsel %vm764, %v742, 0
      %v799 = vsel %vm764, %v743, 0
      %v802 = vsel %vm764, %v744, 0
      %v805 = vsel %vm764, %v745, 0
      %v808 = vsel %vm764, %v746, 0
      %v811 = vsel %vm764, %v747, 0
      %v814 = vsel %vm764, %v748, 0
      %v817 = vsel %vm764, %v749, 0
      %v820 = vsel %vm764, %v750, 0
      %v823 = vsel %vm764, %v751, 0
      %v826 = vsel %vm764, %v752, 0
      %v829 = vsel %vm764, %v753, 0
      %v832 = vsel %vm764, %v754, 0
      %v835 = vsel %vm764, %v755, 0
      %v838 = vsel %vm764, %v756, 0
      %v841 = vsel %vm764, %v757, 0
      %v844 = vsel %vm764, %v758, 0
      %v847 = vsel %vm764, %v759, 0
      %v850 = vsel %vm764, %v760, 0
      %v853 = vsel %vm764, %v761, 0
      %v856 = vsel %vm764, %v762, 0
      %v859 = vsel %vm764, %v763, 0
      %vm861 = vcmask 1045504
      %v863 = vsel %vm861, %v603, 0
      %865 = vmatprep.subr.bf16.mxu0 0
      %866 = vmatpush1.bf16.msra.mxu0 %v597
      %867 = vmatprep.subr.bf16.mxu0 0
      %868 = vmatpush1.bf16.msra.mxu0 %v598
      %869 = vmatprep.subr.bf16.mxu0 0
      %870 = vmatpush1.bf16.msra.mxu0 %v599
      %871 = vmatprep.subr.bf16.mxu0 0
      %872 = vmatpush1.bf16.msra.mxu0 %v600
      %873 = vmatprep.subr.bf16.mxu0 0
      %874 = vmatpush1.bf16.msra.mxu0 %v601
      %875 = vmatprep.subr.bf16.mxu0 0
      %876 = vmatpush1.bf16.msra.mxu0 %v602
      %877 = vmatprep.subr.bf16.mxu0 0
      %878 = vmatpush1.bf16.msra.mxu0 %v863
      %879 = vmatprep.subr.bf16.mxu0 0
      %880 = vmatpush1.bf16.msra.mxu0 0
      %881 = vmatprep.subr.bf16.mxu0 0
      %882 = vmatpush1.bf16.msra.mxu0 0
      %883 = vmatprep.subr.bf16.mxu0 0
      %884 = vmatpush1.bf16.msra.mxu0 0
      %885 = vmatprep.subr.bf16.mxu0 0
      %886 = vmatpush1.bf16.msra.mxu0 0
      %887 = vmatprep.subr.bf16.mxu0 0
      %888 = vmatpush1.bf16.msra.mxu0 0
      %889 = vmatprep.subr.bf16.mxu0 0
      %890 = vmatpush1.bf16.msra.mxu0 0
      %891 = vmatprep.subr.bf16.mxu0 0
      %892 = vmatpush1.bf16.msra.mxu0 0
      %893 = vmatprep.subr.bf16.mxu0 0
      %894 = vmatpush1.bf16.msra.mxu0 0
      %895 = vmatprep.subr.bf16.mxu0 0
      %896 = vmatpush1.bf16.msra.mxu0 0
      %897 = vmatprep.mubr.bf16.mxu0 0
      %898 = vmatmul.mubr.bf16.gmra.mrb[0].mxu0 %v766
      %v899 = vpop.f32.mrb[0].mxu0
      %v900 = vadd.f32 0.0, %v899
      %v901 = vpop.f32.mrb[0].mxu0
      %v902 = vpop.f32.mrb[0].mxu0
      %v903 = vadd.f32 0.0, %v902
      %v904 = vpop.f32.mrb[0].mxu0
      %905 = vmatprep.mubr.bf16.mxu0 0
      %906 = vmatmul.mubr.bf16.gmra.mrb[0].mxu0 %v769
      %v907 = vpop.f32.mrb[0].mxu0
      %v908 = vadd.f32 0.0, %v907
      %v909 = vpop.f32.mrb[0].mxu0
      %v910 = vpop.f32.mrb[0].mxu0
      %v911 = vadd.f32 0.0, %v910
      %v912 = vpop.f32.mrb[0].mxu0
      %913 = vmatprep.mubr.bf16.mxu0 0
      %914 = vmatmul.mubr.bf16.gmra.mrb[0].mxu0 %v772
      %v915 = vpop.f32.mrb[0].mxu0
      %v916 = vadd.f32 0.0, %v915
      %v917 = vpop.f32.mrb[0].mxu0
      %v918 = vpop.f32.mrb[0].mxu0
      %v919 = vadd.f32 0.0, %v918
      %v920 = vpop.f32.mrb[0].mxu0
      %921 = vmatprep.mubr.bf16.mxu0 0
      %922 = vmatmul.mubr.bf16.gmra.mrb[0].mxu0 %v775
      %v923 = vpop.f32.mrb[0].mxu0
      %v924 = vadd.f32 0.0, %v923
      %v925 = vpop.f32.mrb[0].mxu0
      %v926 = vpop.f32.mrb[0].mxu0
      %v927 = vadd.f32 0.0, %v926
      %v928 = vpop.f32.mrb[0].mxu0
      %929 = vmatprep.mubr.bf16.mxu0 0
      %930 = vmatmul.mubr.bf16.gmra.mrb[0].mxu0 %v778
      %v931 = vpop.f32.mrb[0].mxu0
      %v932 = vadd.f32 0.0, %v931
      %v933 = vpop.f32.mrb[0].mxu0
      %v934 = vpop.f32.mrb[0].mxu0
      %v935 = vadd.f32 0.0, %v934
      %v936 = vpop.f32.mrb[0].mxu0
      %937 = vmatprep.mubr.bf16.mxu0 0
      %938 = vmatmul.mubr.bf16.gmra.mrb[0].mxu0 %v781
      %v939 = vpop.f32.mrb[0].mxu0
      %v940 = vadd.f32 0.0, %v939
      %v941 = vpop.f32.mrb[0].mxu0
      %v942 = vpop.f32.mrb[0].mxu0
      %v943 = vadd.f32 0.0, %v942
      %v944 = vpop.f32.mrb[0].mxu0
      %945 = vmatprep.mubr.bf16.mxu0 0
      %946 = vmatmul.mubr.bf16.gmra.mrb[0].mxu0 %v784
      %v947 = vpop.f32.mrb[0].mxu0
      %v948 = vadd.f32 0.0, %v947
      %v949 = vpop.f32.mrb[0].mxu0
      %v950 = vpop.f32.mrb[0].mxu0
      %v951 = vadd.f32 0.0, %v950
      %v952 = vpop.f32.mrb[0].mxu0
      %953 = vmatprep.mubr.bf16.mxu0 0
      %954 = vmatmul.mubr.bf16.gmra.mrb[0].mxu0 %v787
      %v955 = vpop.f32.mrb[0].mxu0
      %v956 = vadd.f32 0.0, %v955
      %v957 = vpop.f32.mrb[0].mxu0
      %v958 = vpop.f32.mrb[0].mxu0
      %v959 = vadd.f32 0.0, %v958
      %v960 = vpop.f32.mrb[0].mxu0
      %961 = vmatprep.mubr.bf16.mxu0 0
      %962 = vmatmul.mubr.bf16.gmra.mrb[0].mxu0 %v790
      %v963 = vpop.f32.mrb[0].mxu0
      %v964 = vadd.f32 0.0, %v963
      %v965 = vpop.f32.mrb[0].mxu0
      %v966 = vpop.f32.mrb[0].mxu0
      %v967 = vadd.f32 0.0, %v966
      %v968 = vpop.f32.mrb[0].mxu0
      %969 = vmatprep.mubr.bf16.mxu0 0
      %970 = vmatmul.mubr.bf16.gmra.mrb[0].mxu0 %v793
      %v971 = vpop.f32.mrb[0].mxu0
      %v972 = vadd.f32 0.0, %v971
      %v973 = vpop.f32.mrb[0].mxu0
      %v974 = vpop.f32.mrb[0].mxu0
      %v975 = vadd.f32 0.0, %v974
      %v976 = vpop.f32.mrb[0].mxu0
      %977 = vmatprep.mubr.bf16.mxu0 0
      %978 = vmatmul.mubr.bf16.gmra.mrb[0].mxu0 %v796
      %v979 = vpop.f32.mrb[0].mxu0
      %v980 = vadd.f32 0.0, %v979
      %v981 = vpop.f32.mrb[0].mxu0
      %v982 = vpop.f32.mrb[0].mxu0
      %v983 = vadd.f32 0.0, %v982
      %v984 = vpop.f32.mrb[0].mxu0
      %985 = vmatprep.mubr.bf16.mxu0 0
      %986 = vmatmul.mubr.bf16.gmra.mrb[0].mxu0 %v799
      %v987 = vpop.f32.mrb[0].mxu0
      %v988 = vadd.f32 0.0, %v987
      %v989 = vpop.f32.mrb[0].mxu0
      %v990 = vpop.f32.mrb[0].mxu0
      %v991 = vadd.f32 0.0, %v990
      %v992 = vpop.f32.mrb[0].mxu0
      %993 = vmatprep.mubr.bf16.mxu0 0
      %994 = vmatmul.mubr.bf16.gmra.mrb[0].mxu0 %v802
      %v995 = vpop.f32.mrb[0].mxu0
      %v996 = vadd.f32 0.0, %v995
      %v997 = vpop.f32.mrb[0].mxu0
      %v998 = vpop.f32.mrb[0].mxu0
      %v999 = vadd.f32 0.0, %v998
      %v1000 = vpop.f32.mrb[0].mxu0
      %1001 = vmatprep.mubr.bf16.mxu0 0
      %1002 = vmatmul.mubr.bf16.gmra.mrb[0].mxu0 %v805
      %v1003 = vpop.f32.mrb[0].mxu0
      %v1004 = vadd.f32 0.0, %v1003
      %v1005 = vpop.f32.mrb[0].mxu0
      %v1006 = vpop.f32.mrb[0].mxu0
      %v1007 = vadd.f32 0.0, %v1006
      %v1008 = vpop.f32.mrb[0].mxu0
      %1009 = vmatprep.mubr.bf16.mxu0 0
      %1010 = vmatmul.mubr.bf16.gmra.mrb[0].mxu0 %v808
      %v1011 = vpop.f32.mrb[0].mxu0
      %v1012 = vadd.f32 0.0, %v1011
      %v1013 = vpop.f32.mrb[0].mxu0
      %v1014 = vpop.f32.mrb[0].mxu0
      %v1015 = vadd.f32 0.0, %v1014
      %v1016 = vpop.f32.mrb[0].mxu0
      %1017 = vmatprep.mubr.bf16.mxu0 0
      %1018 = vmatmul.mubr.bf16.gmra.mrb[0].mxu0 %v811
      %v1019 = vpop.f32.mrb[0].mxu0
      %v1020 = vadd.f32 0.0, %v1019
      %v1021 = vpop.f32.mrb[0].mxu0
      %v1022 = vpop.f32.mrb[0].mxu0
      %v1023 = vadd.f32 0.0, %v1022
      %v1024 = vpop.f32.mrb[0].mxu0
      %1025 = vmatprep.mubr.bf16.mxu0 0
      %1026 = vmatmul.mubr.bf16.gmra.mrb[0].mxu0 %v814
      %v1027 = vpop.f32.mrb[0].mxu0
      %v1028 = vadd.f32 0.0, %v1027
      %v1029 = vpop.f32.mrb[0].mxu0
      %v1030 = vpop.f32.mrb[0].mxu0
      %v1031 = vadd.f32 0.0, %v1030
      %v1032 = vpop.f32.mrb[0].mxu0
      %1033 = vmatprep.mubr.bf16.mxu0 0
      %1034 = vmatmul.mubr.bf16.gmra.mrb[0].mxu0 %v817
      %v1035 = vpop.f32.mrb[0].mxu0
      %v1036 = vadd.f32 0.0, %v1035
      %v1037 = vpop.f32.mrb[0].mxu0
      %v1038 = vpop.f32.mrb[0].mxu0
      %v1039 = vadd.f32 0.0, %v1038
      %v1040 = vpop.f32.mrb[0].mxu0
      %1041 = vmatprep.mubr.bf16.mxu0 0
      %1042 = vmatmul.mubr.bf16.gmra.mrb[0].mxu0 %v820
      %v1043 = vpop.f32.mrb[0].mxu0
      %v1044 = vadd.f32 0.0, %v1043
      %v1045 = vpop.f32.mrb[0].mxu0
      %v1046 = vpop.f32.mrb[0].mxu0
      %v1047 = vadd.f32 0.0, %v1046
      %v1048 = vpop.f32.mrb[0].mxu0
      %1049 = vmatprep.mubr.bf16.mxu0 0
      %1050 = vmatmul.mubr.bf16.gmra.mrb[0].mxu0 %v823
      %v1051 = vpop.f32.mrb[0].mxu0
      %v1052 = vadd.f32 0.0, %v1051
      %v1053 = vpop.f32.mrb[0].mxu0
      %v1054 = vpop.f32.mrb[0].mxu0
      %v1055 = vadd.f32 0.0, %v1054
      %v1056 = vpop.f32.mrb[0].mxu0
      %1057 = vmatprep.mubr.bf16.mxu0 0
      %1058 = vmatmul.mubr.bf16.gmra.mrb[0].mxu0 %v826
      %v1059 = vpop.f32.mrb[0].mxu0
      %v1060 = vadd.f32 0.0, %v1059
      %v1061 = vpop.f32.mrb[0].mxu0
      %v1062 = vpop.f32.mrb[0].mxu0
      %v1063 = vadd.f32 0.0, %v1062
      %v1064 = vpop.f32.mrb[0].mxu0
      %1065 = vmatprep.mubr.bf16.mxu0 0
      %1066 = vmatmul.mubr.bf16.gmra.mrb[0].mxu0 %v829
      %v1067 = vpop.f32.mrb[0].mxu0
      %v1068 = vadd.f32 0.0, %v1067
      %v1069 = vpop.f32.mrb[0].mxu0
      %v1070 = vpop.f32.mrb[0].mxu0
      %v1071 = vadd.f32 0.0, %v1070
      %v1072 = vpop.f32.mrb[0].mxu0
      %1073 = vmatprep.mubr.bf16.mxu0 0
      %1074 = vmatmul.mubr.bf16.gmra.mrb[0].mxu0 %v832
      %v1075 = vpop.f32.mrb[0].mxu0
      %v1076 = vadd.f32 0.0, %v1075
      %v1077 = vpop.f32.mrb[0].mxu0
      %v1078 = vpop.f32.mrb[0].mxu0
      %v1079 = vadd.f32 0.0, %v1078
      %v1080 = vpop.f32.mrb[0].mxu0
      %1081 = vmatprep.mubr.bf16.mxu0 0
      %1082 = vmatmul.mubr.bf16.gmra.mrb[0].mxu0 %v835
      %v1083 = vpop.f32.mrb[0].mxu0
      %v1084 = vadd.f32 0.0, %v1083
      %v1085 = vpop.f32.mrb[0].mxu0
      %v1086 = vpop.f32.mrb[0].mxu0
      %v1087 = vadd.f32 0.0, %v1086
      %v1088 = vpop.f32.mrb[0].mxu0
      %1089 = vmatprep.mubr.bf16.mxu0 0
      %1090 = vmatmul.mubr.bf16.gmra.mrb[0].mxu0 %v838
      %v1091 = vpop.f32.mrb[0].mxu0
      %v1092 = vadd.f32 0.0, %v1091
      %v1093 = vpop.f32.mrb[0].mxu0
      %v1094 = vpop.f32.mrb[0].mxu0
      %v1095 = vadd.f32 0.0, %v1094
      %v1096 = vpop.f32.mrb[0].mxu0
      %1097 = vmatprep.mubr.bf16.mxu0 0
      %1098 = vmatmul.mubr.bf16.gmra.mrb[0].mxu0 %v841
      %v1099 = vpop.f32.mrb[0].mxu0
      %v1100 = vadd.f32 0.0, %v1099
      %v1101 = vpop.f32.mrb[0].mxu0
      %v1102 = vpop.f32.mrb[0].mxu0
      %v1103 = vadd.f32 0.0, %v1102
      %v1104 = vpop.f32.mrb[0].mxu0
      %1105 = vmatprep.mubr.bf16.mxu0 0
      %1106 = vmatmul.mubr.bf16.gmra.mrb[0].mxu0 %v844
      %v1107 = vpop.f32.mrb[0].mxu0
      %v1108 = vadd.f32 0.0, %v1107
      %v1109 = vpop.f32.mrb[0].mxu0
      %v1110 = vpop.f32.mrb[0].mxu0
      %v1111 = vadd.f32 0.0, %v1110
      %v1112 = vpop.f32.mrb[0].mxu0
      %1113 = vmatprep.mubr.bf16.mxu0 0
      %1114 = vmatmul.mubr.bf16.gmra.mrb[0].mxu0 %v847
      %v1115 = vpop.f32.mrb[0].mxu0
      %v1116 = vadd.f32 0.0, %v1115
      %v1117 = vpop.f32.mrb[0].mxu0
      %v1118 = vpop.f32.mrb[0].mxu0
      %v1119 = vadd.f32 0.0, %v1118
      %v1120 = vpop.f32.mrb[0].mxu0
      %1121 = vmatprep.mubr.bf16.mxu0 0
      %1122 = vmatmul.mubr.bf16.gmra.mrb[0].mxu0 %v850
      %v1123 = vpop.f32.mrb[0].mxu0
      %v1124 = vadd.f32 0.0, %v1123
      %v1125 = vpop.f32.mrb[0].mxu0
      %v1126 = vpop.f32.mrb[0].mxu0
      %v1127 = vadd.f32 0.0, %v1126
      %v1128 = vpop.f32.mrb[0].mxu0
      %1129 = vmatprep.mubr.bf16.mxu0 0
      %1130 = vmatmul.mubr.bf16.gmra.mrb[0].mxu0 %v853
      %v1131 = vpop.f32.mrb[0].mxu0
      %v1132 = vadd.f32 0.0, %v1131
      %v1133 = vpop.f32.mrb[0].mxu0
      %v1134 = vpop.f32.mrb[0].mxu0
      %v1135 = vadd.f32 0.0, %v1134
      %v1136 = vpop.f32.mrb[0].mxu0
      %1137 = vmatprep.mubr.bf16.mxu0 0
      %1138 = vmatmul.mubr.bf16.gmra.mrb[0].mxu0 %v856
      %v1139 = vpop.f32.mrb[0].mxu0
      %v1140 = vadd.f32 0.0, %v1139
      %v1141 = vpop.f32.mrb[0].mxu0
      %v1142 = vpop.f32.mrb[0].mxu0
      %v1143 = vadd.f32 0.0, %v1142
      %v1144 = vpop.f32.mrb[0].mxu0
      %1145 = vmatprep.mubr.bf16.mxu0 0
      %1146 = vmatmul.mubr.bf16.gmra.mrb[0].mxu0 %v859
      %v1147 = vpop.f32.mrb[0].mxu0
      %v1148 = vadd.f32 0.0, %v1147
      %v1149 = vpop.f32.mrb[0].mxu0
      %v1150 = vpop.f32.mrb[0].mxu0
      %v1151 = vadd.f32 0.0, %v1150
      %v1152 = vpop.f32.mrb[0].mxu0
      %1153 = vdwg.mxu0
      %v1154 = vlaneseq
      %v1155 = vshrl.u32 %v1154, 7
      %v1156 = vsub.s32 0, %v1155
      %v1157 = vrot.slane %v287, %v1156
      %v1158 = vmul.f32 %v1157, %v900
      %v1159 = vmul.f32 %v1157, %v903
      %v1160 = vmul.f32 %v1157, %v908
      %v1161 = vmul.f32 %v1157, %v911
      %v1162 = vmul.f32 %v1157, %v916
      %v1163 = vmul.f32 %v1157, %v919
      %v1164 = vmul.f32 %v1157, %v924
      %v1165 = vmul.f32 %v1157, %v927
      %v1166 = vadd.f32 %v573, %v1158
      %v1167 = vadd.f32 %v574, %v1159
      %v1168 = vadd.f32 %v575, %v1160
      %v1169 = vadd.f32 %v576, %v1161
      %v1170 = vadd.f32 %v577, %v1162
      %v1171 = vadd.f32 %v578, %v1163
      %v1172 = vadd.f32 %v579, %v1164
      %v1173 = vadd.f32 %v580, %v1165
      %v1174 = vlaneseq
      %v1175 = vshrl.u32 %v1174, 7
      %v1176 = vsub.s32 1, %v1175
      %v1177 = vrot.slane %v287, %v1176
      %v1178 = vmul.f32 %v1177, %v932
      %v1179 = vmul.f32 %v1177, %v935
      %v1180 = vmul.f32 %v1177, %v940
      %v1181 = vmul.f32 %v1177, %v943
      %v1182 = vmul.f32 %v1177, %v948
      %v1183 = vmul.f32 %v1177, %v951
      %v1184 = vmul.f32 %v1177, %v956
      %v1185 = vmul.f32 %v1177, %v959
      %v1186 = vadd.f32 %v1166, %v1178
      %v1187 = vadd.f32 %v1167, %v1179
      %v1188 = vadd.f32 %v1168, %v1180
      %v1189 = vadd.f32 %v1169, %v1181
      %v1190 = vadd.f32 %v1170, %v1182
      %v1191 = vadd.f32 %v1171, %v1183
      %v1192 = vadd.f32 %v1172, %v1184
      %v1193 = vadd.f32 %v1173, %v1185
      %v1194 = vlaneseq
      %v1195 = vshrl.u32 %v1194, 7
      %v1196 = vsub.s32 2, %v1195
      %v1197 = vrot.slane %v287, %v1196
      %v1198 = vmul.f32 %v1197, %v964
      %v1199 = vmul.f32 %v1197, %v967
      %v1200 = vmul.f32 %v1197, %v972
      %v1201 = vmul.f32 %v1197, %v975
      %v1202 = vmul.f32 %v1197, %v980
      %v1203 = vmul.f32 %v1197, %v983
      %v1204 = vmul.f32 %v1197, %v988
      %v1205 = vmul.f32 %v1197, %v991
      %v1206 = vadd.f32 %v1186, %v1198
      %v1207 = vadd.f32 %v1187, %v1199
      %v1208 = vadd.f32 %v1188, %v1200
      %v1209 = vadd.f32 %v1189, %v1201
      %v1210 = vadd.f32 %v1190, %v1202
      %v1211 = vadd.f32 %v1191, %v1203
      %v1212 = vadd.f32 %v1192, %v1204
      %v1213 = vadd.f32 %v1193, %v1205
      %v1214 = vlaneseq
      %v1215 = vshrl.u32 %v1214, 7
      %v1216 = vsub.s32 3, %v1215
      %v1217 = vrot.slane %v287, %v1216
      %v1218 = vmul.f32 %v1217, %v996
      %v1219 = vmul.f32 %v1217, %v999
      %v1220 = vmul.f32 %v1217, %v1004
      %v1221 = vmul.f32 %v1217, %v1007
      %v1222 = vmul.f32 %v1217, %v1012
      %v1223 = vmul.f32 %v1217, %v1015
      %v1224 = vmul.f32 %v1217, %v1020
      %v1225 = vmul.f32 %v1217, %v1023
      %v1226 = vadd.f32 %v1206, %v1218
      %v1227 = vadd.f32 %v1207, %v1219
      %v1228 = vadd.f32 %v1208, %v1220
      %v1229 = vadd.f32 %v1209, %v1221
      %v1230 = vadd.f32 %v1210, %v1222
      %v1231 = vadd.f32 %v1211, %v1223
      %v1232 = vadd.f32 %v1212, %v1224
      %v1233 = vadd.f32 %v1213, %v1225
      %v1234 = vlaneseq
      %v1235 = vshrl.u32 %v1234, 7
      %v1236 = vsub.s32 4, %v1235
      %v1237 = vrot.slane %v287, %v1236
      %v1238 = vmul.f32 %v1237, %v1028
      %v1239 = vmul.f32 %v1237, %v1031
      %v1240 = vmul.f32 %v1237, %v1036
      %v1241 = vmul.f32 %v1237, %v1039
      %v1242 = vmul.f32 %v1237, %v1044
      %v1243 = vmul.f32 %v1237, %v1047
      %v1244 = vmul.f32 %v1237, %v1052
      %v1245 = vmul.f32 %v1237, %v1055
      %v1246 = vadd.f32 %v1226, %v1238
      %v1247 = vadd.f32 %v1227, %v1239
      %v1248 = vadd.f32 %v1228, %v1240
      %v1249 = vadd.f32 %v1229, %v1241
      %v1250 = vadd.f32 %v1230, %v1242
      %v1251 = vadd.f32 %v1231, %v1243
      %v1252 = vadd.f32 %v1232, %v1244
      %v1253 = vadd.f32 %v1233, %v1245
      %v1254 = vlaneseq
      %v1255 = vshrl.u32 %v1254, 7
      %v1256 = vsub.s32 5, %v1255
      %v1257 = vrot.slane %v287, %v1256
      %v1258 = vmul.f32 %v1257, %v1060
      %v1259 = vmul.f32 %v1257, %v1063
      %v1260 = vmul.f32 %v1257, %v1068
      %v1261 = vmul.f32 %v1257, %v1071
      %v1262 = vmul.f32 %v1257, %v1076
      %v1263 = vmul.f32 %v1257, %v1079
      %v1264 = vmul.f32 %v1257, %v1084
      %v1265 = vmul.f32 %v1257, %v1087
      %v1266 = vadd.f32 %v1246, %v1258
      %v1267 = vadd.f32 %v1247, %v1259
      %v1268 = vadd.f32 %v1248, %v1260
      %v1269 = vadd.f32 %v1249, %v1261
      %v1270 = vadd.f32 %v1250, %v1262
      %v1271 = vadd.f32 %v1251, %v1263
      %v1272 = vadd.f32 %v1252, %v1264
      %v1273 = vadd.f32 %v1253, %v1265
      %v1274 = vlaneseq
      %v1275 = vshrl.u32 %v1274, 7
      %v1276 = vsub.s32 6, %v1275
      %v1277 = vrot.slane %v287, %v1276
      %v1278 = vmul.f32 %v1277, %v1092
      %v1279 = vmul.f32 %v1277, %v1095
      %v1280 = vmul.f32 %v1277, %v1100
      %v1281 = vmul.f32 %v1277, %v1103
      %v1282 = vmul.f32 %v1277, %v1108
      %v1283 = vmul.f32 %v1277, %v1111
      %v1284 = vmul.f32 %v1277, %v1116
      %v1285 = vmul.f32 %v1277, %v1119
      %v1286 = vadd.f32 %v1266, %v1278
      %v1287 = vadd.f32 %v1267, %v1279
      %v1288 = vadd.f32 %v1268, %v1280
      %v1289 = vadd.f32 %v1269, %v1281
      %v1290 = vadd.f32 %v1270, %v1282
      %v1291 = vadd.f32 %v1271, %v1283
      %v1292 = vadd.f32 %v1272, %v1284
      %v1293 = vadd.f32 %v1273, %v1285
      %v1294 = vlaneseq
      %v1295 = vshrl.u32 %v1294, 7
      %v1296 = vsub.s32 7, %v1295
      %v1297 = vrot.slane %v287, %v1296
      %v1298 = vmul.f32 %v1297, %v1124
      %v1299 = vmul.f32 %v1297, %v1127
      %v1300 = vmul.f32 %v1297, %v1132
      %v1301 = vmul.f32 %v1297, %v1135
      %v1302 = vmul.f32 %v1297, %v1140
      %v1303 = vmul.f32 %v1297, %v1143
      %v1304 = vmul.f32 %v1297, %v1148
      %v1305 = vmul.f32 %v1297, %v1151
      %v1306 = vadd.f32 %v1286, %v1298
      %v1307 = vadd.f32 %v1287, %v1299
      %v1308 = vadd.f32 %v1288, %v1300
      %v1309 = vadd.f32 %v1289, %v1301
      %v1310 = vadd.f32 %v1290, %v1302
      %v1311 = vadd.f32 %v1291, %v1303
      %v1312 = vadd.f32 %v1292, %v1304
      %v1313 = vadd.f32 %v1293, %v1305
      %v1314 = vxor.u32 %v1306, 2147483648
      %v1315 = vxor.u32 %v1307, 2147483648
      %v1316 = vxor.u32 %v1308, 2147483648
      %v1317 = vxor.u32 %v1309, 2147483648
      %v1318 = vxor.u32 %v1310, 2147483648
      %v1319 = vxor.u32 %v1311, 2147483648
      %v1320 = vxor.u32 %v1312, 2147483648
      %v1321 = vxor.u32 %v1313, 2147483648
      %v1322 = vmul.f32 %v1314, 1.442695
      %v1323 = vpow.pop %v1322
      %v1324 = vmul.f32 %v1315, 1.442695
      %v1325 = vpow.pop %v1324
      %v1326 = vmul.f32 %v1316, 1.442695
      %v1327 = vpow.pop %v1326
      %v1328 = vmul.f32 %v1317, 1.442695
      %v1329 = vpow.pop %v1328
      %v1330 = vmul.f32 %v1318, 1.442695
      %v1331 = vpow.pop %v1330
      %v1332 = vmul.f32 %v1319, 1.442695
      %v1333 = vpow.pop %v1332
      %v1334 = vmul.f32 %v1320, 1.442695
      %v1335 = vpow.pop %v1334
      %v1336 = vmul.f32 %v1321, 1.442695
      %v1337 = vpow.pop %v1336
      %v1338 = vadd.f32 %v1323, 1.0
      %v1339 = vadd.f32 %v1325, 1.0
      %v1340 = vadd.f32 %v1327, 1.0
      %v1341 = vadd.f32 %v1329, 1.0
      %v1342 = vadd.f32 %v1331, 1.0
      %v1343 = vadd.f32 %v1333, 1.0
      %v1344 = vadd.f32 %v1335, 1.0
      %v1345 = vadd.f32 %v1337, 1.0
      %v1346 = vrcp.pop %v1338
      %v1347 = vmul.f32 1.0, %v1346
      %v1348 = vrcp.pop %v1339
      %v1349 = vmul.f32 1.0, %v1348
      %v1350 = vrcp.pop %v1340
      %v1351 = vmul.f32 1.0, %v1350
      %v1352 = vrcp.pop %v1341
      %v1353 = vmul.f32 1.0, %v1352
      %v1354 = vrcp.pop %v1342
      %v1355 = vmul.f32 1.0, %v1354
      %v1356 = vrcp.pop %v1343
      %v1357 = vmul.f32 1.0, %v1356
      %v1358 = vrcp.pop %v1344
      %v1359 = vmul.f32 1.0, %v1358
      %v1360 = vrcp.pop %v1345
      %v1361 = vmul.f32 1.0, %v1360
      %v1362 = vrot.slane %v280, 4
      %v1363 = vrot.slane %v281, 4
      %v1364 = vsel %vm581, %v1362, %v1363
      %v1365 = vrot.slane %v282, 4
      %v1366 = vsel %vm581, %v1363, %v1365
      %v1367 = vrot.slane %v283, 4
      %v1368 = vsel %vm581, %v1365, %v1367
      %v1369 = vrot.slane %v284, 4
      %v1370 = vsel %vm581, %v1367, %v1369
      %v1375 = vmul.f32 %v1347, %v1364
      %v1376 = vmul.f32 %v1349, %v1366
      %v1377 = vmul.f32 %v1351, %v1368
      %v1378 = vmul.f32 %v1353, %v1370
      %v1380 = vsel %vm288, %v1375, 0
      %v1383 = vsel %vm288, %v1376, 0
      %v1386 = vsel %vm288, %v1377, 0
      %v1389 = vsel %vm288, %v1378, 0
      %1391 = vmatprep.subr.mxu0 0.0
      %1392 = vmatpush1.msra.mxu0 %v285
      %1393 = vmatprep.subr.mxu0 0.0
      %1394 = vmatpush1.msra.mxu0 %v286
      %1395 = vmatprep.subr.mxu0 0.0
      %1396 = vmatpush1.msra.mxu0 0.0
      %1397 = vmatprep.subr.mxu0 0.0
      %1398 = vmatpush1.msra.mxu0 0.0
      %1399 = vmatprep.subr.mxu0 0.0
      %1400 = vmatpush1.msra.mxu0 0.0
      %1401 = vmatprep.subr.mxu0 0.0
      %1402 = vmatpush1.msra.mxu0 0.0
      %1403 = vmatprep.subr.mxu0 0.0
      %1404 = vmatpush1.msra.mxu0 0.0
      %1405 = vmatprep.subr.mxu0 0.0
      %1406 = vmatpush1.msra.mxu0 0.0
      %1407 = vmatprep.subr.mxu0 0.0
      %1408 = vmatpush1.msra.mxu0 0.0
      %1409 = vmatprep.subr.mxu0 0.0
      %1410 = vmatpush1.msra.mxu0 0.0
      %1411 = vmatprep.subr.mxu0 0.0
      %1412 = vmatpush1.msra.mxu0 0.0
      %1413 = vmatprep.subr.mxu0 0.0
      %1414 = vmatpush1.msra.mxu0 0.0
      %1415 = vmatprep.subr.mxu0 0.0
      %1416 = vmatpush1.msra.mxu0 0.0
      %1417 = vmatprep.subr.mxu0 0.0
      %1418 = vmatpush1.msra.mxu0 0.0
      %1419 = vmatprep.subr.mxu0 0.0
      %1420 = vmatpush1.msra.mxu0 0.0
      %1421 = vmatprep.subr.mxu0 0.0
      %1422 = vmatpush1.msra.mxu0 0.0
      %1423 = vmatprep.subr.mxu0 0.0
      %1424 = vmatpush1.msra.mxu0 0.0
      %1425 = vmatprep.subr.mxu0 0.0
      %1426 = vmatpush1.msra.mxu0 0.0
      %1427 = vmatprep.subr.mxu0 0.0
      %1428 = vmatpush1.msra.mxu0 0.0
      %1429 = vmatprep.subr.mxu0 0.0
      %1430 = vmatpush1.msra.mxu0 0.0
      %1431 = vmatprep.subr.mxu0 0.0
      %1432 = vmatpush1.msra.mxu0 0.0
      %1433 = vmatprep.subr.mxu0 0.0
      %1434 = vmatpush1.msra.mxu0 0.0
      %1435 = vmatprep.subr.mxu0 0.0
      %1436 = vmatpush1.msra.mxu0 0.0
      %1437 = vmatprep.subr.mxu0 0.0
      %1438 = vmatpush1.msra.mxu0 0.0
      %1439 = vmatprep.subr.mxu0 0.0
      %1440 = vmatpush1.msra.mxu0 0.0
      %1441 = vmatprep.subr.mxu0 0.0
      %1442 = vmatpush1.msra.mxu0 0.0
      %1443 = vmatprep.subr.mxu0 0.0
      %1444 = vmatpush1.msra.mxu0 0.0
      %1445 = vmatprep.subr.mxu0 0.0
      %1446 = vmatpush1.msra.mxu0 0.0
      %1447 = vmatprep.subr.mxu0 0.0
      %1448 = vmatpush1.msra.mxu0 0.0
      %1449 = vmatprep.subr.mxu0 0.0
      %1450 = vmatpush1.msra.mxu0 0.0
      %1451 = vmatprep.subr.mxu0 0.0
      %1452 = vmatpush1.msra.mxu0 0.0
      %1453 = vmatprep.subr.mxu0 0.0
      %1454 = vmatpush1.msra.mxu0 0.0
      %1455 = vmatprep.mubr.f32.mxu0 0.0
      %1456 = vmatmul.mubr.f32.gmra.mrb[0].mxu0 %v1380
      %v1457 = vpop.f32.mrb[0].mxu0
      %v1458 = vadd.f32 0.0, %v1457
      %v1459 = vpop.f32.mrb[0].mxu0
      %1460 = vmatprep.mubr.f32.mxu0 0.0
      %1461 = vmatmul.mubr.f32.gmra.mrb[0].mxu0 %v1383
      %v1462 = vpop.f32.mrb[0].mxu0
      %v1463 = vadd.f32 0.0, %v1462
      %v1464 = vpop.f32.mrb[0].mxu0
      %1465 = vmatprep.mubr.f32.mxu0 0.0
      %1466 = vmatmul.mubr.f32.gmra.mrb[0].mxu0 %v1386
      %v1467 = vpop.f32.mrb[0].mxu0
      %v1468 = vadd.f32 0.0, %v1467
      %v1469 = vpop.f32.mrb[0].mxu0
      %1470 = vmatprep.mubr.f32.mxu0 0.0
      %1471 = vmatmul.mubr.f32.gmra.mrb[0].mxu0 %v1389
      %v1472 = vpop.f32.mrb[0].mxu0
      %v1473 = vadd.f32 0.0, %v1472
      %v1474 = vpop.f32.mrb[0].mxu0
      %1475 = vdwg.mxu0
      %v1477 = vsel %vm288, %v1458, 0
      %v1480 = vsel %vm288, %v1463, 0
      %v1483 = vsel %vm288, %v1468, 0
      %v1486 = vsel %vm288, %v1473, 0
      %1488 = vmatprep.subr.mxu0 0.0
      %1489 = vmatpush1.msra.mxu0 %v285
      %1490 = vmatprep.subr.mxu0 0.0
      %1491 = vmatpush1.msra.mxu0 %v286
      %1492 = vmatprep.subr.mxu0 0.0
      %1493 = vmatpush1.msra.mxu0 0.0
      %1494 = vmatprep.subr.mxu0 0.0
      %1495 = vmatpush1.msra.mxu0 0.0
      %1496 = vmatprep.subr.mxu0 0.0
      %1497 = vmatpush1.msra.mxu0 0.0
      %1498 = vmatprep.subr.mxu0 0.0
      %1499 = vmatpush1.msra.mxu0 0.0
      %1500 = vmatprep.subr.mxu0 0.0
      %1501 = vmatpush1.msra.mxu0 0.0
      %1502 = vmatprep.subr.mxu0 0.0
      %1503 = vmatpush1.msra.mxu0 0.0
      %1504 = vmatprep.subr.mxu0 0.0
      %1505 = vmatpush1.msra.mxu0 0.0
      %1506 = vmatprep.subr.mxu0 0.0
      %1507 = vmatpush1.msra.mxu0 0.0
      %1508 = vmatprep.subr.mxu0 0.0
      %1509 = vmatpush1.msra.mxu0 0.0
      %1510 = vmatprep.subr.mxu0 0.0
      %1511 = vmatpush1.msra.mxu0 0.0
      %1512 = vmatprep.subr.mxu0 0.0
      %1513 = vmatpush1.msra.mxu0 0.0
      %1514 = vmatprep.subr.mxu0 0.0
      %1515 = vmatpush1.msra.mxu0 0.0
      %1516 = vmatprep.subr.mxu0 0.0
      %1517 = vmatpush1.msra.mxu0 0.0
      %1518 = vmatprep.subr.mxu0 0.0
      %1519 = vmatpush1.msra.mxu0 0.0
      %1520 = vmatprep.subr.mxu0 0.0
      %1521 = vmatpush1.msra.mxu0 0.0
      %1522 = vmatprep.subr.mxu0 0.0
      %1523 = vmatpush1.msra.mxu0 0.0
      %1524 = vmatprep.subr.mxu0 0.0
      %1525 = vmatpush1.msra.mxu0 0.0
      %1526 = vmatprep.subr.mxu0 0.0
      %1527 = vmatpush1.msra.mxu0 0.0
      %1528 = vmatprep.subr.mxu0 0.0
      %1529 = vmatpush1.msra.mxu0 0.0
      %1530 = vmatprep.subr.mxu0 0.0
      %1531 = vmatpush1.msra.mxu0 0.0
      %1532 = vmatprep.subr.mxu0 0.0
      %1533 = vmatpush1.msra.mxu0 0.0
      %1534 = vmatprep.subr.mxu0 0.0
      %1535 = vmatpush1.msra.mxu0 0.0
      %1536 = vmatprep.subr.mxu0 0.0
      %1537 = vmatpush1.msra.mxu0 0.0
      %1538 = vmatprep.subr.mxu0 0.0
      %1539 = vmatpush1.msra.mxu0 0.0
      %1540 = vmatprep.subr.mxu0 0.0
      %1541 = vmatpush1.msra.mxu0 0.0
      %1542 = vmatprep.subr.mxu0 0.0
      %1543 = vmatpush1.msra.mxu0 0.0
      %1544 = vmatprep.subr.mxu0 0.0
      %1545 = vmatpush1.msra.mxu0 0.0
      %1546 = vmatprep.subr.mxu0 0.0
      %1547 = vmatpush1.msra.mxu0 0.0
      %1548 = vmatprep.subr.mxu0 0.0
      %1549 = vmatpush1.msra.mxu0 0.0
      %1550 = vmatprep.subr.mxu0 0.0
      %1551 = vmatpush1.msra.mxu0 0.0
      %1552 = vmatprep.mubr.f32.mxu0 0.0
      %1553 = vmatmul.mubr.f32.gmra.mrb[0].mxu0 %v1477
      %v1554 = vpop.f32.mrb[0].mxu0
      %v1555 = vadd.f32 0.0, %v1554
      %v1556 = vpop.f32.mrb[0].mxu0
      %1557 = vmatprep.mubr.f32.mxu0 0.0
      %1558 = vmatmul.mubr.f32.gmra.mrb[0].mxu0 %v1480
      %v1559 = vpop.f32.mrb[0].mxu0
      %v1560 = vadd.f32 0.0, %v1559
      %v1561 = vpop.f32.mrb[0].mxu0
      %1562 = vmatprep.mubr.f32.mxu0 0.0
      %1563 = vmatmul.mubr.f32.gmra.mrb[0].mxu0 %v1483
      %v1564 = vpop.f32.mrb[0].mxu0
      %v1565 = vadd.f32 0.0, %v1564
      %v1566 = vpop.f32.mrb[0].mxu0
      %1567 = vmatprep.mubr.f32.mxu0 0.0
      %1568 = vmatmul.mubr.f32.gmra.mrb[0].mxu0 %v1486
      %v1569 = vpop.f32.mrb[0].mxu0
      %v1570 = vadd.f32 0.0, %v1569
      %v1571 = vpop.f32.mrb[0].mxu0
      %1572 = vdwg.mxu0
      %v1573 = vmul.f32 %v1555, 2.0
      %v1574 = vmul.f32 %v1560, 2.0
      %v1575 = vmul.f32 %v1565, 2.0
      %v1576 = vmul.f32 %v1570, 2.0
      %v1577 = vsub.f32 %v1573, %v1375
      %v1578 = vsub.f32 %v1574, %v1376
      %v1579 = vsub.f32 %v1575, %v1377
      %v1580 = vsub.f32 %v1576, %v1378
      %v1581 = vld [vmem:[%s4] sm:$0xf]
      %v1582 = vld [vmem:[%s4 + $0x4] sm:$0xf]
      %v1583 = vld [vmem:[%s4 + $0x8] sm:$0xf]
      %v1584 = vld [vmem:[%s4 + $0xc] sm:$0xf]
      %v1585 = vld [vmem:[%s4 + $0x10] sm:$0xf]
      %v1586 = vld [vmem:[%s4 + $0x14] sm:$0xf]
      %v1587 = vld [vmem:[%s4 + $0x18] sm:$0xf]
      %v1588 = vld [vmem:[%s4 + $0x1c] sm:$0xf]
      %v1589 = vld [vmem:[%s4 + $0x20] sm:$0xf]
      %v1590 = vld [vmem:[%s4 + $0x24] sm:$0xf]
      %v1591 = vld [vmem:[%s4 + $0x28] sm:$0xf]
      %v1592 = vld [vmem:[%s4 + $0x2c] sm:$0xf]
      %v1593 = vld [vmem:[%s4 + $0x30] sm:$0xf]
      %v1594 = vld [vmem:[%s4 + $0x34] sm:$0xf]
      %v1595 = vld [vmem:[%s4 + $0x38] sm:$0xf]
      %v1596 = vld [vmem:[%s4 + $0x3c] sm:$0xf]
      %v1597 = vld [vmem:[%s4 + $0x40] sm:$0xf]
      %v1598 = vld [vmem:[%s4 + $0x44] sm:$0xf]
      %v1599 = vld [vmem:[%s4 + $0x48] sm:$0xf]
      %v1600 = vld [vmem:[%s4 + $0x4c] sm:$0xf]
      %v1601 = vld [vmem:[%s4 + $0x50] sm:$0xf]
      %v1602 = vld [vmem:[%s4 + $0x54] sm:$0xf]
      %v1603 = vld [vmem:[%s4 + $0x58] sm:$0xf]
      %v1604 = vld [vmem:[%s4 + $0x5c] sm:$0xf]
      %v1605 = vld [vmem:[%s4 + $0x60] sm:$0xf]
      %v1606 = vld [vmem:[%s4 + $0x64] sm:$0xf]
      %v1607 = vld [vmem:[%s4 + $0x68] sm:$0xf]
      %v1608 = vld [vmem:[%s4 + $0x6c] sm:$0xf]
      %v1609 = vld [vmem:[%s4 + $0x70] sm:$0xf]
      %v1610 = vld [vmem:[%s4 + $0x74] sm:$0xf]
      %v1611 = vld [vmem:[%s4 + $0x78] sm:$0xf]
      %v1612 = vld [vmem:[%s4 + $0x7c] sm:$0xf]
      %v1613 = vld [vmem:[%s6] sm:$0xff]
      %v1614 = vld [vmem:[%s6 + $0x8] sm:$0xff]
      %v1615 = vld [vmem:[%s6 + $0x10] sm:$0xff]
      %v1616 = vld [vmem:[%s6 + $0x18] sm:$0xff]
      %v1617 = vrot.slane %v1375, 4
      %v1618 = vrot.slane %v1376, 4
      %v1619 = vsel %vm581, %v1617, %v1618
      %v1620 = vrot.slane %v1377, 4
      %v1621 = vsel %vm581, %v1618, %v1620
      %v1622 = vrot.slane %v1378, 4
      %v1623 = vsel %vm581, %v1620, %v1622
      %v1633 = vrot.slane %v1577, 4
      %v1634 = vrot.slane %v1578, 4
      %v1635 = vsel %vm581, %v1633, %v1634
      %v1636 = vrot.slane %v1579, 4
      %v1637 = vsel %vm581, %v1634, %v1636
      %v1638 = vrot.slane %v1580, 4
      %v1639 = vsel %vm581, %v1636, %v1638
      %v1645 = vsel %vm581, %v280, %v1617
      %v1646 = vsel %vm581, %v1622, %v582
      %v1647 = vsel %vm581, %v504, %v1633
      %v1648 = vpack.c.bf16 %v1619, %v1645
      %v1649 = vpack.c.bf16 %v1623, %v1621
      %v1650 = vpack.c.bf16 %v1458, %v1646
      %v1651 = vpack.c.bf16 %v1468, %v1463
      %v1652 = vpack.c.bf16 %v1647, %v1473
      %v1653 = vpack.c.bf16 %v1637, %v1635
      %v1654 = vpack.c.bf16 %v1638, %v1639
      %v1687 = vunpack.c.l.b16 %v1581
      %v1688 = vunpack.c.l.b16 %v1582
      %v1689 = vunpack.c.l.b16 %v1583
      %v1690 = vunpack.c.l.b16 %v1584
      %v1691 = vunpack.c.l.b16 %v1585
      %v1692 = vunpack.c.l.b16 %v1586
      %v1693 = vunpack.c.l.b16 %v1587
      %v1694 = vunpack.c.l.b16 %v1588
      %v1695 = vunpack.c.l.b16 %v1589
      %v1696 = vunpack.c.l.b16 %v1590
      %v1697 = vunpack.c.l.b16 %v1591
      %v1698 = vunpack.c.l.b16 %v1592
      %v1699 = vunpack.c.l.b16 %v1593
      %v1700 = vunpack.c.l.b16 %v1594
      %v1701 = vunpack.c.l.b16 %v1595
      %v1702 = vunpack.c.l.b16 %v1596
      %v1703 = vunpack.c.l.b16 %v1597
      %v1704 = vunpack.c.l.b16 %v1598
      %v1705 = vunpack.c.l.b16 %v1599
      %v1706 = vunpack.c.l.b16 %v1600
      %v1707 = vunpack.c.l.b16 %v1601
      %v1708 = vunpack.c.l.b16 %v1602
      %v1709 = vunpack.c.l.b16 %v1603
      %v1710 = vunpack.c.l.b16 %v1604
      %v1711 = vunpack.c.l.b16 %v1605
      %v1712 = vunpack.c.l.b16 %v1606
      %v1713 = vunpack.c.l.b16 %v1607
      %v1714 = vunpack.c.l.b16 %v1608
      %v1715 = vunpack.c.l.b16 %v1609
      %v1716 = vunpack.c.l.b16 %v1610
      %v1717 = vunpack.c.l.b16 %v1611
      %v1718 = vunpack.c.l.b16 %v1612
      %v1719 = vpack.c.b16 %v1688, %v1687
      %v1720 = vpack.c.b16 %v1690, %v1689
      %v1721 = vpack.c.b16 %v1692, %v1691
      %v1722 = vpack.c.b16 %v1694, %v1693
      %v1723 = vpack.c.b16 %v1696, %v1695
      %v1724 = vpack.c.b16 %v1698, %v1697
      %v1725 = vpack.c.b16 %v1700, %v1699
      %v1726 = vpack.c.b16 %v1702, %v1701
      %v1727 = vpack.c.b16 %v1704, %v1703
      %v1728 = vpack.c.b16 %v1706, %v1705
      %v1729 = vpack.c.b16 %v1708, %v1707
      %v1730 = vpack.c.b16 %v1710, %v1709
      %v1731 = vpack.c.b16 %v1712, %v1711
      %v1732 = vpack.c.b16 %v1714, %v1713
      %v1733 = vpack.c.b16 %v1716, %v1715
      %v1734 = vpack.c.b16 %v1718, %v1717
      %v1736 = vsel %vm764, %v1719, 0
      %v1739 = vsel %vm764, %v1720, 0
      %v1742 = vsel %vm764, %v1721, 0
      %v1745 = vsel %vm764, %v1722, 0
      %v1748 = vsel %vm764, %v1723, 0
      %v1751 = vsel %vm764, %v1724, 0
      %v1754 = vsel %vm764, %v1725, 0
      %v1757 = vsel %vm764, %v1726, 0
      %v1760 = vsel %vm764, %v1727, 0
      %v1763 = vsel %vm764, %v1728, 0
      %v1766 = vsel %vm764, %v1729, 0
      %v1769 = vsel %vm764, %v1730, 0
      %v1772 = vsel %vm764, %v1731, 0
      %v1775 = vsel %vm764, %v1732, 0
      %v1778 = vsel %vm764, %v1733, 0
      %v1781 = vsel %vm764, %v1734, 0
      %v1784 = vsel %vm861, %v1654, 0
      %1786 = vmatprep.subr.bf16.mxu0 0
      %1787 = vmatpush1.bf16.msra.mxu0 %v1648
      %1788 = vmatprep.subr.bf16.mxu0 0
      %1789 = vmatpush1.bf16.msra.mxu0 %v1649
      %1790 = vmatprep.subr.bf16.mxu0 0
      %1791 = vmatpush1.bf16.msra.mxu0 %v1650
      %1792 = vmatprep.subr.bf16.mxu0 0
      %1793 = vmatpush1.bf16.msra.mxu0 %v1651
      %1794 = vmatprep.subr.bf16.mxu0 0
      %1795 = vmatpush1.bf16.msra.mxu0 %v1652
      %1796 = vmatprep.subr.bf16.mxu0 0
      %1797 = vmatpush1.bf16.msra.mxu0 %v1653
      %1798 = vmatprep.subr.bf16.mxu0 0
      %1799 = vmatpush1.bf16.msra.mxu0 %v1784
      %1800 = vmatprep.subr.bf16.mxu0 0
      %1801 = vmatpush1.bf16.msra.mxu0 0
      %1802 = vmatprep.subr.bf16.mxu0 0
      %1803 = vmatpush1.bf16.msra.mxu0 0
      %1804 = vmatprep.subr.bf16.mxu0 0
      %1805 = vmatpush1.bf16.msra.mxu0 0
      %1806 = vmatprep.subr.bf16.mxu0 0
      %1807 = vmatpush1.bf16.msra.mxu0 0
      %1808 = vmatprep.subr.bf16.mxu0 0
      %1809 = vmatpush1.bf16.msra.mxu0 0
      %1810 = vmatprep.subr.bf16.mxu0 0
      %1811 = vmatpush1.bf16.msra.mxu0 0
      %1812 = vmatprep.subr.bf16.mxu0 0
      %1813 = vmatpush1.bf16.msra.mxu0 0
      %1814 = vmatprep.subr.bf16.mxu0 0
      %1815 = vmatpush1.bf16.msra.mxu0 0
      %1816 = vmatprep.subr.bf16.mxu0 0
      %1817 = vmatpush1.bf16.msra.mxu0 0
      %1818 = vmatprep.mubr.bf16.mxu0 0
      %1819 = vmatmul.mubr.bf16.gmra.mrb[0].mxu0 %v1736
      %v1820 = vpop.f32.mrb[0].mxu0
      %v1821 = vadd.f32 0.0, %v1820
      %v1822 = vpop.f32.mrb[0].mxu0
      %v1823 = vpop.f32.mrb[0].mxu0
      %v1824 = vadd.f32 0.0, %v1823
      %v1825 = vpop.f32.mrb[0].mxu0
      %1826 = vmatprep.mubr.bf16.mxu0 0
      %1827 = vmatmul.mubr.bf16.gmra.mrb[0].mxu0 %v1739
      %v1828 = vpop.f32.mrb[0].mxu0
      %v1829 = vadd.f32 0.0, %v1828
      %v1830 = vpop.f32.mrb[0].mxu0
      %v1831 = vpop.f32.mrb[0].mxu0
      %v1832 = vadd.f32 0.0, %v1831
      %v1833 = vpop.f32.mrb[0].mxu0
      %1834 = vmatprep.mubr.bf16.mxu0 0
      %1835 = vmatmul.mubr.bf16.gmra.mrb[0].mxu0 %v1742
      %v1836 = vpop.f32.mrb[0].mxu0
      %v1837 = vadd.f32 0.0, %v1836
      %v1838 = vpop.f32.mrb[0].mxu0
      %v1839 = vpop.f32.mrb[0].mxu0
      %v1840 = vadd.f32 0.0, %v1839
      %v1841 = vpop.f32.mrb[0].mxu0
      %1842 = vmatprep.mubr.bf16.mxu0 0
      %1843 = vmatmul.mubr.bf16.gmra.mrb[0].mxu0 %v1745
      %v1844 = vpop.f32.mrb[0].mxu0
      %v1845 = vadd.f32 0.0, %v1844
      %v1846 = vpop.f32.mrb[0].mxu0
      %v1847 = vpop.f32.mrb[0].mxu0
      %v1848 = vadd.f32 0.0, %v1847
      %v1849 = vpop.f32.mrb[0].mxu0
      %1850 = vmatprep.mubr.bf16.mxu0 0
      %1851 = vmatmul.mubr.bf16.gmra.mrb[0].mxu0 %v1748
      %v1852 = vpop.f32.mrb[0].mxu0
      %v1853 = vadd.f32 0.0, %v1852
      %v1854 = vpop.f32.mrb[0].mxu0
      %v1855 = vpop.f32.mrb[0].mxu0
      %v1856 = vadd.f32 0.0, %v1855
      %v1857 = vpop.f32.mrb[0].mxu0
      %1858 = vmatprep.mubr.bf16.mxu0 0
      %1859 = vmatmul.mubr.bf16.gmra.mrb[0].mxu0 %v1751
      %v1860 = vpop.f32.mrb[0].mxu0
      %v1861 = vadd.f32 0.0, %v1860
      %v1862 = vpop.f32.mrb[0].mxu0
      %v1863 = vpop.f32.mrb[0].mxu0
      %v1864 = vadd.f32 0.0, %v1863
      %v1865 = vpop.f32.mrb[0].mxu0
      %1866 = vmatprep.mubr.bf16.mxu0 0
      %1867 = vmatmul.mubr.bf16.gmra.mrb[0].mxu0 %v1754
      %v1868 = vpop.f32.mrb[0].mxu0
      %v1869 = vadd.f32 0.0, %v1868
      %v1870 = vpop.f32.mrb[0].mxu0
      %v1871 = vpop.f32.mrb[0].mxu0
      %v1872 = vadd.f32 0.0, %v1871
      %v1873 = vpop.f32.mrb[0].mxu0
      %1874 = vmatprep.mubr.bf16.mxu0 0
      %1875 = vmatmul.mubr.bf16.gmra.mrb[0].mxu0 %v1757
      %v1876 = vpop.f32.mrb[0].mxu0
      %v1877 = vadd.f32 0.0, %v1876
      %v1878 = vpop.f32.mrb[0].mxu0
      %v1879 = vpop.f32.mrb[0].mxu0
      %v1880 = vadd.f32 0.0, %v1879
      %v1881 = vpop.f32.mrb[0].mxu0
      %1882 = vmatprep.mubr.bf16.mxu0 0
      %1883 = vmatmul.mubr.bf16.gmra.mrb[0].mxu0 %v1760
      %v1884 = vpop.f32.mrb[0].mxu0
      %v1885 = vadd.f32 0.0, %v1884
      %v1886 = vpop.f32.mrb[0].mxu0
      %v1887 = vpop.f32.mrb[0].mxu0
      %v1888 = vadd.f32 0.0, %v1887
      %v1889 = vpop.f32.mrb[0].mxu0
      %1890 = vmatprep.mubr.bf16.mxu0 0
      %1891 = vmatmul.mubr.bf16.gmra.mrb[0].mxu0 %v1763
      %v1892 = vpop.f32.mrb[0].mxu0
      %v1893 = vadd.f32 0.0, %v1892
      %v1894 = vpop.f32.mrb[0].mxu0
      %v1895 = vpop.f32.mrb[0].mxu0
      %v1896 = vadd.f32 0.0, %v1895
      %v1897 = vpop.f32.mrb[0].mxu0
      %1898 = vmatprep.mubr.bf16.mxu0 0
      %1899 = vmatmul.mubr.bf16.gmra.mrb[0].mxu0 %v1766
      %v1900 = vpop.f32.mrb[0].mxu0
      %v1901 = vadd.f32 0.0, %v1900
      %v1902 = vpop.f32.mrb[0].mxu0
      %v1903 = vpop.f32.mrb[0].mxu0
      %v1904 = vadd.f32 0.0, %v1903
      %v1905 = vpop.f32.mrb[0].mxu0
      %1906 = vmatprep.mubr.bf16.mxu0 0
      %1907 = vmatmul.mubr.bf16.gmra.mrb[0].mxu0 %v1769
      %v1908 = vpop.f32.mrb[0].mxu0
      %v1909 = vadd.f32 0.0, %v1908
      %v1910 = vpop.f32.mrb[0].mxu0
      %v1911 = vpop.f32.mrb[0].mxu0
      %v1912 = vadd.f32 0.0, %v1911
      %v1913 = vpop.f32.mrb[0].mxu0
      %1914 = vmatprep.mubr.bf16.mxu0 0
      %1915 = vmatmul.mubr.bf16.gmra.mrb[0].mxu0 %v1772
      %v1916 = vpop.f32.mrb[0].mxu0
      %v1917 = vadd.f32 0.0, %v1916
      %v1918 = vpop.f32.mrb[0].mxu0
      %v1919 = vpop.f32.mrb[0].mxu0
      %v1920 = vadd.f32 0.0, %v1919
      %v1921 = vpop.f32.mrb[0].mxu0
      %1922 = vmatprep.mubr.bf16.mxu0 0
      %1923 = vmatmul.mubr.bf16.gmra.mrb[0].mxu0 %v1775
      %v1924 = vpop.f32.mrb[0].mxu0
      %v1925 = vadd.f32 0.0, %v1924
      %v1926 = vpop.f32.mrb[0].mxu0
      %v1927 = vpop.f32.mrb[0].mxu0
      %v1928 = vadd.f32 0.0, %v1927
      %v1929 = vpop.f32.mrb[0].mxu0
      %1930 = vmatprep.mubr.bf16.mxu0 0
      %1931 = vmatmul.mubr.bf16.gmra.mrb[0].mxu0 %v1778
      %v1932 = vpop.f32.mrb[0].mxu0
      %v1933 = vadd.f32 0.0, %v1932
      %v1934 = vpop.f32.mrb[0].mxu0
      %v1935 = vpop.f32.mrb[0].mxu0
      %v1936 = vadd.f32 0.0, %v1935
      %v1937 = vpop.f32.mrb[0].mxu0
      %1938 = vmatprep.mubr.bf16.mxu0 0
      %1939 = vmatmul.mubr.bf16.gmra.mrb[0].mxu0 %v1781
      %v1940 = vpop.f32.mrb[0].mxu0
      %v1941 = vadd.f32 0.0, %v1940
      %v1942 = vpop.f32.mrb[0].mxu0
      %v1943 = vpop.f32.mrb[0].mxu0
      %v1944 = vadd.f32 0.0, %v1943
      %v1945 = vpop.f32.mrb[0].mxu0
      %1946 = vdwg.mxu0
      %v1947 = vmul.f32 %v1157, %v1821
      %v1948 = vmul.f32 %v1157, %v1824
      %v1949 = vmul.f32 %v1157, %v1829
      %v1950 = vmul.f32 %v1157, %v1832
      %v1951 = vadd.f32 %v1613, %v1947
      %v1952 = vadd.f32 %v1614, %v1948
      %v1953 = vadd.f32 %v1615, %v1949
      %v1954 = vadd.f32 %v1616, %v1950
      %v1955 = vmul.f32 %v1177, %v1837
      %v1956 = vmul.f32 %v1177, %v1840
      %v1957 = vmul.f32 %v1177, %v1845
      %v1958 = vmul.f32 %v1177, %v1848
      %v1959 = vadd.f32 %v1951, %v1955
      %v1960 = vadd.f32 %v1952, %v1956
      %v1961 = vadd.f32 %v1953, %v1957
      %v1962 = vadd.f32 %v1954, %v1958
      %v1963 = vmul.f32 %v1197, %v1853
      %v1964 = vmul.f32 %v1197, %v1856
      %v1965 = vmul.f32 %v1197, %v1861
      %v1966 = vmul.f32 %v1197, %v1864
      %v1967 = vadd.f32 %v1959, %v1963
      %v1968 = vadd.f32 %v1960, %v1964
      %v1969 = vadd.f32 %v1961, %v1965
      %v1970 = vadd.f32 %v1962, %v1966
      %v1971 = vmul.f32 %v1217, %v1869
      %v1972 = vmul.f32 %v1217, %v1872
      %v1973 = vmul.f32 %v1217, %v1877
      %v1974 = vmul.f32 %v1217, %v1880
      %v1975 = vadd.f32 %v1967, %v1971
      %v1976 = vadd.f32 %v1968, %v1972
      %v1977 = vadd.f32 %v1969, %v1973
      %v1978 = vadd.f32 %v1970, %v1974
      %v1979 = vmul.f32 %v1237, %v1885
      %v1980 = vmul.f32 %v1237, %v1888
      %v1981 = vmul.f32 %v1237, %v1893
      %v1982 = vmul.f32 %v1237, %v1896
      %v1983 = vadd.f32 %v1975, %v1979
      %v1984 = vadd.f32 %v1976, %v1980
      %v1985 = vadd.f32 %v1977, %v1981
      %v1986 = vadd.f32 %v1978, %v1982
      %v1987 = vmul.f32 %v1257, %v1901
      %v1988 = vmul.f32 %v1257, %v1904
      %v1989 = vmul.f32 %v1257, %v1909
      %v1990 = vmul.f32 %v1257, %v1912
      %v1991 = vadd.f32 %v1983, %v1987
      %v1992 = vadd.f32 %v1984, %v1988
      %v1993 = vadd.f32 %v1985, %v1989
      %v1994 = vadd.f32 %v1986, %v1990
      %v1995 = vmul.f32 %v1277, %v1917
      %v1996 = vmul.f32 %v1277, %v1920
      %v1997 = vmul.f32 %v1277, %v1925
      %v1998 = vmul.f32 %v1277, %v1928
      %v1999 = vadd.f32 %v1991, %v1995
      %v2000 = vadd.f32 %v1992, %v1996
      %v2001 = vadd.f32 %v1993, %v1997
      %v2002 = vadd.f32 %v1994, %v1998
      %v2003 = vmul.f32 %v1297, %v1933
      %v2004 = vmul.f32 %v1297, %v1936
      %v2005 = vmul.f32 %v1297, %v1941
      %v2006 = vmul.f32 %v1297, %v1944
      %v2007 = vadd.f32 %v1999, %v2003
      %v2008 = vadd.f32 %v2000, %v2004
      %v2009 = vadd.f32 %v2001, %v2005
      %v2010 = vadd.f32 %v2002, %v2006
      %v2011 = vtanh.pop %v2007
      %v2012 = vtanh.pop %v2008
      %v2013 = vtanh.pop %v2009
      %v2014 = vtanh.pop %v2010
      %v2015 = vmul.f32 %v1355, %v1364
      %v2016 = vmul.f32 %v1357, %v1366
      %v2017 = vmul.f32 %v1359, %v1368
      %v2018 = vmul.f32 %v1361, %v1370
      %v2019 = vsub.f32 1.0, %v1355
      %v2020 = vsub.f32 1.0, %v1357
      %v2021 = vsub.f32 1.0, %v1359
      %v2022 = vsub.f32 1.0, %v1361
      %v2023 = vmul.f32 %v2019, %v2011
      %v2024 = vmul.f32 %v2020, %v2012
      %v2025 = vmul.f32 %v2021, %v2013
      %v2026 = vmul.f32 %v2022, %v2014
      %v2027 = vadd.f32 %v2015, %v2023
      %v2028 = vadd.f32 %v2016, %v2024
      %v2029 = vadd.f32 %v2017, %v2025
      %v2030 = vadd.f32 %v2018, %v2026
      %2031 = vst.msk [vmem:[%s278] sm:$0xff] %vm288, %v2027
      %2032 = vst.msk [vmem:[%s278 + $0x8] sm:$0xff] %vm288, %v2028
      %2033 = vst.msk [vmem:[%s278 + $0x10] sm:$0xff] %vm288, %v2029
      %2034 = vst.msk [vmem:[%s278 + $0x18] sm:$0xff] %vm288, %v2030
      %p2035 = scmp.lt.s32.totalorder %s18, 1
      %s2036 = scalar_select %p2035, %s18, 1
      %s2037 = smul.addr %s2036, 4
      %s2038 = smul.addr %s2037, 8
      %s2039 = scalar_lea.vmem %s7, %s2038
      // Predicated region
      $region49: #{tpu_custom_call.1} parent=47 // pred_check
        %p2040 = pneg %p188
      $region50: #{tpu_custom_call.1} parent=47 // pred_check_branch
        %2042 = sbr.rel (%p2040) target = $region52
      $region51: #{tpu_custom_call.1} parent=47 // pred_region
        _
      $region52: #{tpu_custom_call.1} parent=47 // pred_fallthru
        _
    $region48: #{tpu_custom_call.1} parent=5 // pred_fallthru
      _
    %p2043 = scmp.le.s32.totalorder 2, %s13
    // Predicated region
    $region53: #{tpu_custom_call.1} parent=5 // pred_check
      %p2044 = pneg %p2043
    $region54: #{tpu_custom_call.1} parent=5 // pred_check_branch
      %2046 = sbr.rel (%p2044) target = $region56
    $region55: #{tpu_custom_call.1} parent=5 // pred_region
      %s2047 = ssub.s32 %s13, 2
      // Predicated region
      $region57: #{tpu_custom_call.1} parent=55 // pred_check
        %p2048 = pneg %p194
      $region58: #{tpu_custom_call.1} parent=55 // pred_check_branch
        %2050 = sbr.rel (%p2048) target = $region60
      $region59: #{tpu_custom_call.1} parent=55 // pred_region
        %p2051 = scmp.lt.s32.totalorder %s19, 1
        %s2052 = scalar_select %p2051, %s19, 1
        %s2053 = smul.addr %s2052, 4
        %s2054 = smul.addr %s2053, 8
        %s2055 = scalar_lea.vmem %s7, %s2054
      $region60: #{tpu_custom_call.1} parent=55 // pred_fallthru
        _
    $region56: #{tpu_custom_call.1} parent=5 // pred_fallthru
      _
  $region6: #{tpu_custom_call.1} parent=0 // loop_footer
    %s17 = sadd.s32 1, %s13
  $region7: #{tpu_custom_call.1} parent=0 // loop_footer_branch
    %12 = sbr.rel target = $region3
  $region8: #{tpu_custom_call.1} parent=0 // loop_exit
    _

</llo_original>
